<compile_context>
chip_gen: v7x
topology: tpu7x:2x2x1
jax: 0.10.0
libtpu: 0.0.40
codegen_flags: <defaults>
</compile_context>

<pallas_src>
import functools

import jax
import jax.numpy as jnp
from jax.experimental import pallas as pl
from jax.experimental.pallas import tpu as pltpu


def nfm_kernel(idx_ref, tbl_ref, w1_ref, b1_ref, w2_ref, b2_ref, w3_ref, b3_ref,
               out_ref, *, num_fields, embed_size, total_feat_pad):
    F, E, TFP = num_fields, embed_size, total_feat_pad
    TB = idx_ref.shape[1]

    # ---- Fused embedding + order-1 gather via a one-hot MXU matmul ----
    # Field offset ranges are disjoint, so the per-field one-hots never overlap:
    # a logical OR equals their sum (exactly F ones per valid column).
    row_ids = jax.lax.broadcasted_iota(jnp.int32, (TFP, TB), 0)
    hit = row_ids == idx_ref[0:1, :]
    for f in range(1, F):                       # F is small; unrolled, reads per-field from the ref
        hit = jnp.logical_or(hit, row_ids == idx_ref[f:f + 1, :])
    onehot = hit.astype(jnp.float32)            # (TFP, TB)

    # VMEM-resident combined table rows: [emb.T (E) ; (emb**2).T (E) ; lin_row (1)].
    # One matmul yields sum_f emb, sum_f emb**2 and the order-1 linear sum at once.
    g = jnp.dot(tbl_ref[...], onehot, preferred_element_type=jnp.float32)  # (2E+1, TB)
    sum_f = g[0:E, :]                           # (E, TB)
    sum_sq = g[E:2 * E, :]                      # (E, TB)
    lin = g[2 * E:2 * E + 1, :]                 # (1, TB)  order-1 linear sum

    # FactorizationMachine(reduce_sum=False): bi-interaction pooling.
    cross = 0.5 * (sum_f * sum_f - sum_sq)      # (E, TB)

    # ---- My_MLP(input_dim=E, hidden_nbs=[H1,H2], out_dim=1, last_act=None) ----
    # Batch rides the lane axis: (H, K) @ (K, TB) keeps MXU N = TB >= 256.
    h = jnp.dot(w1_ref[...], cross, preferred_element_type=jnp.float32) + b1_ref[...]
    h = jnp.maximum(h, 0.0)                     # ReLU
    h = jnp.dot(w2_ref[...], h, preferred_element_type=jnp.float32) + b2_ref[...]
    h = jnp.maximum(h, 0.0)                     # ReLU
    mlp = jnp.dot(w3_ref[...], h, preferred_element_type=jnp.float32)      # (1, TB)

    # Folded scalar bias (MLP output bias + fc/linear-part bias) lives in SMEM.
    out_ref[...] = jax.nn.sigmoid(lin + mlp + b3_ref[0, 0])                # (1, TB), lane-dense store


def nfm_forward(data, params, *, block_b=2048):
    """data: (B, F) int32 raw per-field indices. block_b must be a multiple of 128."""
    emb_table = params["emb_table"]     # (total_feat, E)
    lin_table = params["lin_table"]     # (total_feat,)
    lin_bias = params["lin_bias"]       # scalar
    offsets = params["offsets"]         # (F,) int32 cumulative field offsets
    W1, b1 = params["W1"], params["b1"]   # (E, H1), (1, H1)
    W2, b2 = params["W2"], params["b2"]   # (H1, H2), (1, H2)
    W3, b3 = params["W3"], params["b3"]   # (H2, 1), (1, 1)

    B, F = data.shape
    total_feat, E = emb_table.shape
    H1 = W1.shape[1]
    H2 = W2.shape[1]

    # Lane-align the feature axis of the VMEM-resident combined table.
    TFP = pl.cdiv(total_feat, 128) * 128
    pad_t = TFP - total_feat
    emb_T = jnp.pad(emb_table.T, ((0, 0), (0, pad_t)))                  # (E, TFP)
    sq_T = jnp.pad((emb_table * emb_table).T, ((0, 0), (0, pad_t)))     # (E, TFP)
    lin_row = jnp.pad(lin_table[None, :], ((0, 0), (0, pad_t)))         # (1, TFP)
    tbl = jnp.concatenate([emb_T, sq_T, lin_row], axis=0)               # (2E+1, TFP)

    # Pre-transposed weights / biases so activations are (dim, TB).
    W1T, W2T, W3T = W1.T, W2.T, W3.T                    # (H1,E), (H2,H1), (1,H2)
    b1c, b2c = b1.T, b2.T                               # (H1,1), (H2,1)
    b3s = (b3 + lin_bias).reshape(1, 1).astype(jnp.float32)   # folded scalar bias -> SMEM

    # Batch tiling: lane-dim tile, multiple of 128; cap so small B still gets
    # >= 2 grid steps (v7x megacore via the "parallel" batch axis).
    TB = min(block_b, max(128, pl.cdiv(pl.cdiv(B, 2), 128) * 128))
    nb = pl.cdiv(B, TB)
    B_pad = nb * TB

    # Only the tiny int32 index array is transposed / padded on the host.
    idx = (data.astype(jnp.int32) + offsets[None, :]).T                 # (F, B)
    if B_pad != B:
        idx = jnp.pad(idx, ((0, 0), (0, B_pad - B)))                    # padded cols discarded below

    kernel = functools.partial(nfm_kernel, num_fields=F, embed_size=E,
                               total_feat_pad=TFP)

    out = pl.pallas_call(
        kernel,
        out_shape=jax.ShapeDtypeStruct((1, B_pad), jnp.float32),
        grid=(nb,),
        in_specs=[
            # Streamed, double-buffered raw index tile (batch on the lane axis).
            pl.BlockSpec((F, TB), lambda i: (0, i)),
            # VMEM-resident tables / weights: constant index_map => DMA'd once.
            pl.BlockSpec((2 * E + 1, TFP), lambda i: (0, 0)),
            pl.BlockSpec((H1, E), lambda i: (0, 0)),
            pl.BlockSpec((H1, 1), lambda i: (0, 0)),
            pl.BlockSpec((H2, H1), lambda i: (0, 0)),
            pl.BlockSpec((H2, 1), lambda i: (0, 0)),
            pl.BlockSpec((1, H2), lambda i: (0, 0)),
            # Folded scalar bias as an SMEM scalar.
            pl.BlockSpec(memory_space=pltpu.MemorySpace.SMEM),
        ],
        out_specs=pl.BlockSpec((1, TB), lambda i: (0, i)),
        compiler_params=pltpu.CompilerParams(
            dimension_semantics=("parallel",)),
    )(idx, tbl, W1T, b1c, W2T, b2c, W3T, b3s)

    return out[0, :B]   # drop padded columns + squeeze: (B,)


def nfm_reference(data, params):
    """Pure-JAX reference for correctness checking."""
    idx = data + params["offsets"][None, :]
    emb = jnp.take(params["emb_table"], idx, axis=0)
    lin = jnp.take(params["lin_table"], idx, axis=0)
    sum_f = jnp.sum(emb, axis=1)
    cross = 0.5 * (sum_f * sum_f - jnp.sum(emb * emb, axis=1))
    h = jnp.maximum(cross @ params["W1"] + params["b1"], 0.0)
    h = jnp.maximum(h @ params["W2"] + params["b2"], 0.0)
    mlp_out = h @ params["W3"] + params["b3"]
    lin_out = jnp.sum(lin, axis=1, keepdims=True) + params["lin_bias"]
    return jax.nn.sigmoid((lin_out + mlp_out)[:, 0])


if __name__ == "__main__":
    # Model hyper-params (small, consistent with the module's __init__).
    feature_dims = (10, 20, 30, 40)      # 4 categorical fields
    embed_size = 16
    hidden_nbs = (32, 16)
    B = 1000                             # deliberately not a multiple of the tile size
    F = len(feature_dims)
    total_feat = sum(feature_dims)
    H1, H2 = hidden_nbs

    key = jax.random.PRNGKey(0)
    keys = jax.random.split(key, 12)

    params = {
        "emb_table": 0.1 * jax.random.normal(keys[0], (total_feat, embed_size), jnp.float32),
        "lin_table": 0.1 * jax.random.normal(keys[1], (total_feat,), jnp.float32),
        "lin_bias": jnp.float32(0.05),
        "offsets": jnp.cumsum(jnp.asarray((0,) + feature_dims[:-1], jnp.int32)),
        "W1": 0.1 * jax.random.normal(keys[2], (embed_size, H1), jnp.float32),
        "b1": 0.01 * jax.random.normal(keys[3], (1, H1), jnp.float32),
        "W2": 0.1 * jax.random.normal(keys[4], (H1, H2), jnp.float32),
        "b2": 0.01 * jax.random.normal(keys[5], (1, H2), jnp.float32),
        "W3": 0.1 * jax.random.normal(keys[6], (H2, 1), jnp.float32),
        "b3": 0.01 * jax.random.normal(keys[7], (1, 1), jnp.float32),
    }

    # Per-field raw indices in [0, feature_dims[f]).
    u = jax.random.uniform(keys[8], (B, F))
    data = (u * jnp.asarray(feature_dims, jnp.float32)[None, :]).astype(jnp.int32)

    out = nfm_forward(data, params, block_b=2048)
    out = jax.block_until_ready(out)

    ref = nfm_reference(data, params)
    assert out.shape == (B,)
    assert jnp.allclose(out, ref, atol=1e-5, rtol=1e-5)

    print("KERNEL_OK")
</pallas_src>

<mosaic_0001>
module attributes {stable_mosaic.version = 11 : i64} {
  func.func @nfm_kernel(%arg0: i32, %arg1: memref<4x512xi32, #tpu.memory_space<vmem>>, %arg2: memref<33x128xf32, #tpu.memory_space<vmem>>, %arg3: memref<32x16xf32, #tpu.memory_space<vmem>>, %arg4: memref<32x1xf32, #tpu.memory_space<vmem>>, %arg5: memref<16x32xf32, #tpu.memory_space<vmem>>, %arg6: memref<16x1xf32, #tpu.memory_space<vmem>>, %arg7: memref<1x16xf32, #tpu.memory_space<vmem>>, %arg8: memref<1x1xf32, #tpu.memory_space<smem>>, %arg9: memref<1x512xf32, #tpu.memory_space<vmem>>) attributes {dimension_semantics = [#tpu.dimension_semantics<parallel>], iteration_bounds = array<i64: 2>, scalar_prefetch = 0 : i64, scratch_operands = 0 : i64, tpu.core_type = #tpu.core_type<tc>, window_params = [{transform_indices = @transform_0, window_bounds = array<i64: 4, 512>}, {pipeline_mode = #tpu.pipeline_mode<synchronous>, transform_indices = @transform_1, window_bounds = array<i64: 33, 128>}, {pipeline_mode = #tpu.pipeline_mode<synchronous>, transform_indices = @transform_2, window_bounds = array<i64: 32, 16>}, {pipeline_mode = #tpu.pipeline_mode<synchronous>, transform_indices = @transform_3, window_bounds = array<i64: 32, 1>}, {pipeline_mode = #tpu.pipeline_mode<synchronous>, transform_indices = @transform_4, window_bounds = array<i64: 16, 32>}, {pipeline_mode = #tpu.pipeline_mode<synchronous>, transform_indices = @transform_5, window_bounds = array<i64: 16, 1>}, {pipeline_mode = #tpu.pipeline_mode<synchronous>, transform_indices = @transform_6, window_bounds = array<i64: 1, 16>}, {transform_indices = @transform_7, window_bounds = array<i64: 1, 1>}, {transform_indices = @transform_8, window_bounds = array<i64: 1, 512>}]} {
    %0 = tpu.iota {dimensions = array<i32: 0>} : vector<128x512xi32>
    %c0 = arith.constant 0 : index
    %c0_0 = arith.constant 0 : index
    %1 = vector.load %arg1[%c0, %c0_0] : memref<4x512xi32, #tpu.memory_space<vmem>>, vector<1x512xi32>
    %2 = vector.broadcast %1 : vector<1x512xi32> to vector<128x512xi32>
    %3 = arith.cmpi eq, %0, %2 : vector<128x512xi32>
    %c1 = arith.constant 1 : index
    %c0_1 = arith.constant 0 : index
    %4 = vector.load %arg1[%c1, %c0_1] : memref<4x512xi32, #tpu.memory_space<vmem>>, vector<1x512xi32>
    %5 = vector.broadcast %4 : vector<1x512xi32> to vector<128x512xi32>
    %6 = arith.cmpi eq, %0, %5 : vector<128x512xi32>
    %7 = arith.ori %3, %6 : vector<128x512xi1>
    %c2 = arith.constant 2 : index
    %c0_2 = arith.constant 0 : index
    %8 = vector.load %arg1[%c2, %c0_2] : memref<4x512xi32, #tpu.memory_space<vmem>>, vector<1x512xi32>
    %9 = vector.broadcast %8 : vector<1x512xi32> to vector<128x512xi32>
    %10 = arith.cmpi eq, %0, %9 : vector<128x512xi32>
    %11 = arith.ori %7, %10 : vector<128x512xi1>
    %c3 = arith.constant 3 : index
    %c0_3 = arith.constant 0 : index
    %12 = vector.load %arg1[%c3, %c0_3] : memref<4x512xi32, #tpu.memory_space<vmem>>, vector<1x512xi32>
    %13 = vector.broadcast %12 : vector<1x512xi32> to vector<128x512xi32>
    %14 = arith.cmpi eq, %0, %13 : vector<128x512xi32>
    %15 = arith.ori %11, %14 : vector<128x512xi1>
    %16 = arith.extui %15 : vector<128x512xi1> to vector<128x512xi32>
    %17 = arith.sitofp %16 : vector<128x512xi32> to vector<128x512xf32>
    %c0_4 = arith.constant 0 : index
    %c0_5 = arith.constant 0 : index
    %18 = vector.load %arg2[%c0_4, %c0_5] : memref<33x128xf32, #tpu.memory_space<vmem>>, vector<33x128xf32>
    %cst = arith.constant dense<0.000000e+00> : vector<33x512xf32>
    %19 = tpu.matmul %18, %17, %cst {dimension_numbers = #tpu.dot_dimension_numbers<[1], [0], [0], [1], [0, 0, 1, 1], [], []>} : vector<33x128xf32>, vector<128x512xf32>, vector<33x512xf32> -> vector<33x512xf32>
    %20 = vector.extract_strided_slice %19 {offsets = [0, 0], sizes = [16, 512], strides = [1, 1]} : vector<33x512xf32> to vector<16x512xf32>
    %21 = vector.extract_strided_slice %19 {offsets = [16, 0], sizes = [16, 512], strides = [1, 1]} : vector<33x512xf32> to vector<16x512xf32>
    %22 = vector.extract_strided_slice %19 {offsets = [32, 0], sizes = [1, 512], strides = [1, 1]} : vector<33x512xf32> to vector<1x512xf32>
    %23 = arith.mulf %20, %20 : vector<16x512xf32>
    %24 = arith.subf %23, %21 : vector<16x512xf32>
    %cst_6 = arith.constant 5.000000e-01 : f32
    %25 = vector.broadcast %cst_6 : f32 to vector<16x512xf32>
    %26 = arith.mulf %25, %24 : vector<16x512xf32>
    %c0_7 = arith.constant 0 : index
    %c0_8 = arith.constant 0 : index
    %27 = vector.load %arg3[%c0_7, %c0_8] : memref<32x16xf32, #tpu.memory_space<vmem>>, vector<32x16xf32>
    %cst_9 = arith.constant dense<0.000000e+00> : vector<32x512xf32>
    %28 = tpu.matmul %27, %26, %cst_9 {dimension_numbers = #tpu.dot_dimension_numbers<[1], [0], [0], [1], [0, 0, 1, 1], [], []>} : vector<32x16xf32>, vector<16x512xf32>, vector<32x512xf32> -> vector<32x512xf32>
    %c0_10 = arith.constant 0 : index
    %c0_11 = arith.constant 0 : index
    %29 = vector.load %arg4[%c0_10, %c0_11] : memref<32x1xf32, #tpu.memory_space<vmem>>, vector<32x1xf32>
    %30 = vector.broadcast %29 : vector<32x1xf32> to vector<32x512xf32>
    %31 = arith.addf %28, %30 : vector<32x512xf32>
    %cst_12 = arith.constant 0.000000e+00 : f32
    %32 = vector.broadcast %cst_12 : f32 to vector<32x512xf32>
    %33 = arith.maximumf %31, %32 : vector<32x512xf32>
    %c0_13 = arith.constant 0 : index
    %c0_14 = arith.constant 0 : index
    %34 = vector.load %arg5[%c0_13, %c0_14] : memref<16x32xf32, #tpu.memory_space<vmem>>, vector<16x32xf32>
    %cst_15 = arith.constant dense<0.000000e+00> : vector<16x512xf32>
    %35 = tpu.matmul %34, %33, %cst_15 {dimension_numbers = #tpu.dot_dimension_numbers<[1], [0], [0], [1], [0, 0, 1, 1], [], []>} : vector<16x32xf32>, vector<32x512xf32>, vector<16x512xf32> -> vector<16x512xf32>
    %c0_16 = arith.constant 0 : index
    %c0_17 = arith.constant 0 : index
    %36 = vector.load %arg6[%c0_16, %c0_17] : memref<16x1xf32, #tpu.memory_space<vmem>>, vector<16x1xf32>
    %37 = vector.broadcast %36 : vector<16x1xf32> to vector<16x512xf32>
    %38 = arith.addf %35, %37 : vector<16x512xf32>
    %cst_18 = arith.constant 0.000000e+00 : f32
    %39 = vector.broadcast %cst_18 : f32 to vector<16x512xf32>
    %40 = arith.maximumf %38, %39 : vector<16x512xf32>
    %c0_19 = arith.constant 0 : index
    %c0_20 = arith.constant 0 : index
    %41 = vector.load %arg7[%c0_19, %c0_20] : memref<1x16xf32, #tpu.memory_space<vmem>>, vector<1x16xf32>
    %cst_21 = arith.constant dense<0.000000e+00> : vector<1x512xf32>
    %42 = tpu.matmul %41, %40, %cst_21 {dimension_numbers = #tpu.dot_dimension_numbers<[1], [0], [0], [1], [0, 0, 1, 1], [], []>} : vector<1x16xf32>, vector<16x512xf32>, vector<1x512xf32> -> vector<1x512xf32>
    %43 = arith.addf %22, %42 : vector<1x512xf32>
    %c0_22 = arith.constant 0 : index
    %c0_23 = arith.constant 0 : index
    %44 = memref.load %arg8[%c0_22, %c0_23] : memref<1x1xf32, #tpu.memory_space<smem>>
    %45 = vector.broadcast %44 : f32 to vector<1x512xf32>
    %46 = arith.addf %43, %45 : vector<1x512xf32>
    %47 = arith.negf %46 : vector<1x512xf32>
    %48 = math.exp %47 : vector<1x512xf32>
    %cst_24 = arith.constant 1.000000e+00 : f32
    %49 = vector.broadcast %cst_24 : f32 to vector<1x512xf32>
    %50 = arith.addf %49, %48 : vector<1x512xf32>
    %51 = arith.divf %49, %50 : vector<1x512xf32>
    %c0_25 = arith.constant 0 : index
    %c0_26 = arith.constant 0 : index
    %52 = vector.load %arg9[%c0_25, %c0_26] : memref<1x512xf32, #tpu.memory_space<vmem>>, vector<1x512xf32>
    tpu.vector_store %arg9[%c0_25, %c0_26], %51 {strides = array<i32>} : memref<1x512xf32, #tpu.memory_space<vmem>>, vector<1x512xf32>,
    return
  }
  func.func @transform_0(%arg0: i32) -> (i32, i32) {
    %c0_i32 = arith.constant 0 : i32
    %c0_i32_0 = arith.constant 0 : i32
    return %c0_i32, %arg0 : i32, i32
  }
  func.func @transform_1(%arg0: i32) -> (i32, i32) {
    %c0_i32 = arith.constant 0 : i32
    %c0_i32_0 = arith.constant 0 : i32
    %c0_i32_1 = arith.constant 0 : i32
    return %c0_i32, %c0_i32_0 : i32, i32
  }
  func.func @transform_2(%arg0: i32) -> (i32, i32) {
    %c0_i32 = arith.constant 0 : i32
    %c0_i32_0 = arith.constant 0 : i32
    %c0_i32_1 = arith.constant 0 : i32
    return %c0_i32, %c0_i32_0 : i32, i32
  }
  func.func @transform_3(%arg0: i32) -> (i32, i32) {
    %c0_i32 = arith.constant 0 : i32
    %c0_i32_0 = arith.constant 0 : i32
    %c0_i32_1 = arith.constant 0 : i32
    return %c0_i32, %c0_i32_0 : i32, i32
  }
  func.func @transform_4(%arg0: i32) -> (i32, i32) {
    %c0_i32 = arith.constant 0 : i32
    %c0_i32_0 = arith.constant 0 : i32
    %c0_i32_1 = arith.constant 0 : i32
    return %c0_i32, %c0_i32_0 : i32, i32
  }
  func.func @transform_5(%arg0: i32) -> (i32, i32) {
    %c0_i32 = arith.constant 0 : i32
    %c0_i32_0 = arith.constant 0 : i32
    %c0_i32_1 = arith.constant 0 : i32
    return %c0_i32, %c0_i32_0 : i32, i32
  }
  func.func @transform_6(%arg0: i32) -> (i32, i32) {
    %c0_i32 = arith.constant 0 : i32
    %c0_i32_0 = arith.constant 0 : i32
    %c0_i32_1 = arith.constant 0 : i32
    return %c0_i32, %c0_i32_0 : i32, i32
  }
  func.func @transform_7(%arg0: i32) -> (i32, i32) {
    %c0_i32 = arith.constant 0 : i32
    %c0_i32_0 = arith.constant 0 : i32
    %c0_i32_1 = arith.constant 0 : i32
    return %c0_i32, %c0_i32_0 : i32, i32
  }
  func.func @transform_8(%arg0: i32) -> (i32, i32) {
    %c0_i32 = arith.constant 0 : i32
    %c0_i32_0 = arith.constant 0 : i32
    return %c0_i32, %arg0 : i32, i32
  }
}

</mosaic_0001>

<llo_original>
// kernel: tpu_custom_call.1
$region0: #{tpu_custom_call.1}
  #allocation0 [shape = 'u32[]', space=smem, size = 0x4, offset = 0x4, fixed_abs, tag = 'smem constant byte address 0x4 - core index']
  #allocation1 [shape = 'u32[144,128]{1,0:T(1,128)}', space=vmem, size = 0x12000, scoped, tag = 'internal scratch']
  #allocation2 [shape = 'f32[1,1]{1,0:T(1,128)S(6)}', space=smem, size = 0x200, scoped, tag = 'scoped memory for tpu_custom_call.1']
  %s0 = inlined_call_operand.vmem [shape: s32[4,1024], index: 0, kind: input, shape index: {}]
  %s1 = inlined_call_operand.vmem [shape: f32[33,128], index: 1, kind: input, shape index: {}]
  %s2 = inlined_call_operand.vmem [shape: f32[32,16], index: 2, kind: input, shape index: {}]
  %s3 = inlined_call_operand.vmem [shape: f32[32,1], index: 3, kind: input, shape index: {}]
  %s4 = inlined_call_operand.vmem [shape: f32[16,32], index: 4, kind: input, shape index: {}]
  %s5 = inlined_call_operand.vmem [shape: f32[16,1], index: 5, kind: input, shape index: {}]
  %s6 = inlined_call_operand.vmem [shape: f32[1,16], index: 6, kind: input, shape index: {}]
  %s7 = inlined_call_operand.<no memory space> [shape: f32[1,1], index: 7, kind: input, shape index: {}]
  %s8 = inlined_call_operand.hbm [shape: f32[1,1024], index: 8, kind: output, shape index: {}]
  %s9 = sld [smem:[#allocation0]]
  $region65: #{tpu_custom_call.1} parent=0
    _
  %s11 = ssub.s32 1, %s9
  %s12 = scalar_select 0, %s11, %s9
  %13 = sst [smem:[#allocation2]] %s7
  $region1: #{tpu_custom_call.1} parent=0
    #allocation3 [shape = 'u8[4096]{0}', space=vmem, size = 0x1000, scoped, tag = 'output window, operand 0']
    #allocation4 [shape = 's32[2]{0}', space=sflag, size = 0x8, scoped, tag = 'scoped memory for tpu_custom_call.1']
    %14 = vsyncpa [#allocation4], 0
    %s15 = scalar_lea.sflag [#allocation4], 1
    %16 = vsyncpa %s15, 0
    loop: start=0, step=1, limit=4
    $region2: #{tpu_custom_call.1} parent=1 // loop_pre_header
      _
    $region3: #{tpu_custom_call.1} parent=1 // loop_header
      %s18 = sphi 0, %s22
      %p19 = scmp.ge.s32.totalorder %s18, 4
      %s28 = sphi 0, %s30
      %s31 = sphi 0, %s28
      %s32 = sphi 0, %s31
      %s48 = sphi 0, %s32
      %s52 = sphi 0, %s52
      %s54 = sphi 0, %s52
      %s55 = sphi 0, %s54
      %s69 = sphi 0, %s55
      %s73 = sphi 0, %s73
      %s75 = sphi 0, %s73
      %s76 = sphi 0, %s75
      %s90 = sphi 0, %s76
      %s94 = sphi 0, %s94
      %s96 = sphi 0, %s94
      %s97 = sphi 0, %s96
      %s111 = sphi 0, %s97
      %s115 = sphi 0, %s115
      %s117 = sphi 0, %s115
      %s118 = sphi 0, %s117
      %s132 = sphi 0, %s118
      %s136 = sphi 0, %s136
      %s138 = sphi 0, %s136
      %s139 = sphi 0, %s138
      %s153 = sphi 0, %s139
      %s157 = sphi 0, %s157
      %s159 = sphi 0, %s157
      %s160 = sphi 0, %s159
      %s174 = sphi 0, %s160
      %s178 = sphi 0, %s178
      %s180 = sphi 0, %s178
      %s181 = sphi 0, %s180
      %s195 = sphi 0, %s181
      %s201 = sphi 0, %s203
      %s204 = sphi 0, %s201
      %s205 = sphi 0, %s204
      %s221 = sphi 0, %s205
    $region4: #{tpu_custom_call.1} parent=1 // loop_header_branch
      %21 = sbr.rel (%p19) target = $region8
    $region5: #{tpu_custom_call.1} parent=1 // loop_body
      %s23 = ssub.s32 %s18, 1
      %s24 = ssub.s32 %s18, 2
      %s25 = sadd.s32 %s18, 1
      %s26 = ssub.s32 %s18, %s25
      %p27 = scmp.eq.s32.totalorder %s26, 0
      %s29 = sadd.s32 %s28, 1
      %s30 = scalar_select %p27, %s28, %s29
      %p33 = pneg %p27
      %p34 = scmp.eq.s32.totalorder %s18, 1
      %p35 = por %p33, %p34
      %p36 = scmp.ne.s32.totalorder %s28, %s31
      %p37 = scmp.eq.s32.totalorder %s18, 0
      %p38 = por %p36, %p37
      %p39 = scmp.ne.s32.totalorder %s28, %s31
      %p40 = scmp.eq.s32.totalorder %s23, 1
      %p41 = por %p39, %p40
      %p42 = scmp.ne.s32.totalorder %s31, %s32
      %p43 = scmp.eq.s32.totalorder %s23, 0
      %p44 = por %p42, %p43
      %p45 = scmp.ne.s32.totalorder %s31, %s32
      %p46 = scmp.eq.s32.totalorder %s24, 1
      %p47 = por %p45, %p46
      %p49 = scmp.ne.s32.totalorder %s32, %s48
      %p50 = scmp.eq.s32.totalorder %s24, 0
      %p51 = por %p49, %p50
      %s53 = sadd.s32 %s52, 1
      %p56 = scmp.eq.s32.totalorder %s18, 1
      %p57 = scmp.ne.s32.totalorder %s52, %s54
      %p58 = scmp.eq.s32.totalorder %s18, 0
      %p59 = por %p57, %p58
      %p60 = scmp.ne.s32.totalorder %s52, %s54
      %p61 = scmp.eq.s32.totalorder %s23, 1
      %p62 = por %p60, %p61
      %p63 = scmp.ne.s32.totalorder %s54, %s55
      %p64 = scmp.eq.s32.totalorder %s23, 0
      %p65 = por %p63, %p64
      %p66 = scmp.ne.s32.totalorder %s54, %s55
      %p67 = scmp.eq.s32.totalorder %s24, 1
      %p68 = por %p66, %p67
      %p70 = scmp.ne.s32.totalorder %s55, %s69
      %p71 = scmp.eq.s32.totalorder %s24, 0
      %p72 = por %p70, %p71
      %s74 = sadd.s32 %s73, 1
      %p77 = scmp.eq.s32.totalorder %s18, 1
      %p78 = scmp.ne.s32.totalorder %s73, %s75
      %p79 = scmp.eq.s32.totalorder %s18, 0
      %p80 = por %p78, %p79
      %p81 = scmp.ne.s32.totalorder %s73, %s75
      %p82 = scmp.eq.s32.totalorder %s23, 1
      %p83 = por %p81, %p82
      %p84 = scmp.ne.s32.totalorder %s75, %s76
      %p85 = scmp.eq.s32.totalorder %s23, 0
      %p86 = por %p84, %p85
      %p87 = scmp.ne.s32.totalorder %s75, %s76
      %p88 = scmp.eq.s32.totalorder %s24, 1
      %p89 = por %p87, %p88
      %p91 = scmp.ne.s32.totalorder %s76, %s90
      %p92 = scmp.eq.s32.totalorder %s24, 0
      %p93 = por %p91, %p92
      %s95 = sadd.s32 %s94, 1
      %p98 = scmp.eq.s32.totalorder %s18, 1
      %p99 = scmp.ne.s32.totalorder %s94, %s96
      %p100 = scmp.eq.s32.totalorder %s18, 0
      %p101 = por %p99, %p100
      %p102 = scmp.ne.s32.totalorder %s94, %s96
      %p103 = scmp.eq.s32.totalorder %s23, 1
      %p104 = por %p102, %p103
      %p105 = scmp.ne.s32.totalorder %s96, %s97
      %p106 = scmp.eq.s32.totalorder %s23, 0
      %p107 = por %p105, %p106
      %p108 = scmp.ne.s32.totalorder %s96, %s97
      %p109 = scmp.eq.s32.totalorder %s24, 1
      %p110 = por %p108, %p109
      %p112 = scmp.ne.s32.totalorder %s97, %s111
      %p113 = scmp.eq.s32.totalorder %s24, 0
      %p114 = por %p112, %p113
      %s116 = sadd.s32 %s115, 1
      %p119 = scmp.eq.s32.totalorder %s18, 1
      %p120 = scmp.ne.s32.totalorder %s115, %s117
      %p121 = scmp.eq.s32.totalorder %s18, 0
      %p122 = por %p120, %p121
      %p123 = scmp.ne.s32.totalorder %s115, %s117
      %p124 = scmp.eq.s32.totalorder %s23, 1
      %p125 = por %p123, %p124
      %p126 = scmp.ne.s32.totalorder %s117, %s118
      %p127 = scmp.eq.s32.totalorder %s23, 0
      %p128 = por %p126, %p127
      %p129 = scmp.ne.s32.totalorder %s117, %s118
      %p130 = scmp.eq.s32.totalorder %s24, 1
      %p131 = por %p129, %p130
      %p133 = scmp.ne.s32.totalorder %s118, %s132
      %p134 = scmp.eq.s32.totalorder %s24, 0
      %p135 = por %p133, %p134
      %s137 = sadd.s32 %s136, 1
      %p140 = scmp.eq.s32.totalorder %s18, 1
      %p141 = scmp.ne.s32.totalorder %s136, %s138
      %p142 = scmp.eq.s32.totalorder %s18, 0
      %p143 = por %p141, %p142
      %p144 = scmp.ne.s32.totalorder %s136, %s138
      %p145 = scmp.eq.s32.totalorder %s23, 1
      %p146 = por %p144, %p145
      %p147 = scmp.ne.s32.totalorder %s138, %s139
      %p148 = scmp.eq.s32.totalorder %s23, 0
      %p149 = por %p147, %p148
      %p150 = scmp.ne.s32.totalorder %s138, %s139
      %p151 = scmp.eq.s32.totalorder %s24, 1
      %p152 = por %p150, %p151
      %p154 = scmp.ne.s32.totalorder %s139, %s153
      %p155 = scmp.eq.s32.totalorder %s24, 0
      %p156 = por %p154, %p155
      %s158 = sadd.s32 %s157, 1
      %p161 = scmp.eq.s32.totalorder %s18, 1
      %p162 = scmp.ne.s32.totalorder %s157, %s159
      %p163 = scmp.eq.s32.totalorder %s18, 0
      %p164 = por %p162, %p163
      %p165 = scmp.ne.s32.totalorder %s157, %s159
      %p166 = scmp.eq.s32.totalorder %s23, 1
      %p167 = por %p165, %p166
      %p168 = scmp.ne.s32.totalorder %s159, %s160
      %p169 = scmp.eq.s32.totalorder %s23, 0
      %p170 = por %p168, %p169
      %p171 = scmp.ne.s32.totalorder %s159, %s160
      %p172 = scmp.eq.s32.totalorder %s24, 1
      %p173 = por %p171, %p172
      %p175 = scmp.ne.s32.totalorder %s160, %s174
      %p176 = scmp.eq.s32.totalorder %s24, 0
      %p177 = por %p175, %p176
      %s179 = sadd.s32 %s178, 1
      %p182 = scmp.eq.s32.totalorder %s18, 1
      %p183 = scmp.ne.s32.totalorder %s178, %s180
      %p184 = scmp.eq.s32.totalorder %s18, 0
      %p185 = por %p183, %p184
      %p186 = scmp.ne.s32.totalorder %s178, %s180
      %p187 = scmp.eq.s32.totalorder %s23, 1
      %p188 = por %p186, %p187
      %p189 = scmp.ne.s32.totalorder %s180, %s181
      %p190 = scmp.eq.s32.totalorder %s23, 0
      %p191 = por %p189, %p190
      %p192 = scmp.ne.s32.totalorder %s180, %s181
      %p193 = scmp.eq.s32.totalorder %s24, 1
      %p194 = por %p192, %p193
      %p196 = scmp.ne.s32.totalorder %s181, %s195
      %p197 = scmp.eq.s32.totalorder %s24, 0
      %p198 = por %p196, %p197
      %s199 = ssub.s32 %s18, %s25
      %p200 = scmp.eq.s32.totalorder %s199, 0
      %s202 = sadd.s32 %s201, 1
      %s203 = scalar_select %p200, %s201, %s202
      %p206 = pneg %p200
      %p207 = scmp.eq.s32.totalorder %s18, 1
      %p208 = por %p206, %p207
      %p209 = scmp.ne.s32.totalorder %s201, %s204
      %p210 = scmp.eq.s32.totalorder %s18, 0
      %p211 = por %p209, %p210
      %p212 = scmp.ne.s32.totalorder %s201, %s204
      %p213 = scmp.eq.s32.totalorder %s23, 1
      %p214 = por %p212, %p213
      %p215 = scmp.ne.s32.totalorder %s204, %s205
      %p216 = scmp.eq.s32.totalorder %s23, 0
      %p217 = por %p215, %p216
      %p218 = scmp.ne.s32.totalorder %s204, %s205
      %p219 = scmp.eq.s32.totalorder %s24, 1
      %p220 = por %p218, %p219
      %p222 = scmp.ne.s32.totalorder %s205, %s221
      %p223 = scmp.eq.s32.totalorder %s24, 0
      %p224 = por %p222, %p223
      %p225 = scmp.le.s32.totalorder 1, %s18
      %p226 = scmp.lt.s32.totalorder %s18, 3
      %p227 = pnand %p225, %p226
      %p228 = pneg %p227
      // Predicated region
      $region9: #{tpu_custom_call.1} parent=5 // pred_check
        _
      $region10: #{tpu_custom_call.1} parent=5 // pred_check_branch
        %230 = sbr.rel (%p227) target = $region12
      $region11: #{tpu_custom_call.1} parent=5 // pred_region
        %s231 = ssub.s32 %s18, 1
        // Predicated region
        $region13: #{tpu_custom_call.1} parent=11 // pred_check
          %p232 = pneg %p65
        $region14: #{tpu_custom_call.1} parent=11 // pred_check_branch
          %234 = sbr.rel (%p232) target = $region16
        $region15: #{tpu_custom_call.1} parent=11 // pred_region
          _
        $region16: #{tpu_custom_call.1} parent=11 // pred_fallthru
          _
        // Predicated region
        $region17: #{tpu_custom_call.1} parent=11 // pred_check
          %p235 = pneg %p86
        $region18: #{tpu_custom_call.1} parent=11 // pred_check_branch
          %237 = sbr.rel (%p235) target = $region20
        $region19: #{tpu_custom_call.1} parent=11 // pred_region
          _
        $region20: #{tpu_custom_call.1} parent=11 // pred_fallthru
          _
        // Predicated region
        $region21: #{tpu_custom_call.1} parent=11 // pred_check
          %p238 = pneg %p107
        $region22: #{tpu_custom_call.1} parent=11 // pred_check_branch
          %240 = sbr.rel (%p238) target = $region24
        $region23: #{tpu_custom_call.1} parent=11 // pred_region
          _
        $region24: #{tpu_custom_call.1} parent=11 // pred_fallthru
          _
        // Predicated region
        $region25: #{tpu_custom_call.1} parent=11 // pred_check
          %p241 = pneg %p128
        $region26: #{tpu_custom_call.1} parent=11 // pred_check_branch
          %243 = sbr.rel (%p241) target = $region28
        $region27: #{tpu_custom_call.1} parent=11 // pred_region
          _
        $region28: #{tpu_custom_call.1} parent=11 // pred_fallthru
          _
        // Predicated region
        $region29: #{tpu_custom_call.1} parent=11 // pred_check
          %p244 = pneg %p149
        $region30: #{tpu_custom_call.1} parent=11 // pred_check_branch
          %246 = sbr.rel (%p244) target = $region32
        $region31: #{tpu_custom_call.1} parent=11 // pred_region
          _
        $region32: #{tpu_custom_call.1} parent=11 // pred_fallthru
          _
        // Predicated region
        $region33: #{tpu_custom_call.1} parent=11 // pred_check
          %p247 = pneg %p170
        $region34: #{tpu_custom_call.1} parent=11 // pred_check_branch
          %249 = sbr.rel (%p247) target = $region36
        $region35: #{tpu_custom_call.1} parent=11 // pred_region
          _
        $region36: #{tpu_custom_call.1} parent=11 // pred_fallthru
          _
        // Predicated region
        $region37: #{tpu_custom_call.1} parent=11 // pred_check
          %p250 = pneg %p191
        $region38: #{tpu_custom_call.1} parent=11 // pred_check_branch
          %252 = sbr.rel (%p250) target = $region40
        $region39: #{tpu_custom_call.1} parent=11 // pred_region
          _
        $region40: #{tpu_custom_call.1} parent=11 // pred_fallthru
          _
      $region12: #{tpu_custom_call.1} parent=5 // pred_fallthru
        _
      %p253 = scmp.lt.s32.totalorder %s18, 2
      // Predicated region
      $region41: #{tpu_custom_call.1} parent=5 // pred_check
        %p254 = pneg %p253
      $region42: #{tpu_custom_call.1} parent=5 // pred_check_branch
        %256 = sbr.rel (%p254) target = $region44
      $region43: #{tpu_custom_call.1} parent=5 // pred_region
        // Predicated region
        $region45: #{tpu_custom_call.1} parent=43 // pred_check
          %p257 = pneg %p38
        $region46: #{tpu_custom_call.1} parent=43 // pred_check_branch
          %259 = sbr.rel (%p257) target = $region48
        $region47: #{tpu_custom_call.1} parent=43 // pred_region
          %s260 = smul.u32 4, %s18
          %p261 = scmp.lt.s32.totalorder %s260, 7
          %s262 = scalar_select %p261, %s260, 7
          %s263 = smul.addr %s262, 4
          %s264 = scalar_lea.vmem %s0, %s263
          %s265 = smul.u32 4, %s18
        $region48: #{tpu_custom_call.1} parent=43 // pred_fallthru
          _
      $region44: #{tpu_custom_call.1} parent=5 // pred_fallthru
        _
      %p266 = scmp.le.s32.totalorder 1, %s18
      %p267 = scmp.lt.s32.totalorder %s18, 3
      %p268 = pnand %p266, %p267
      %p269 = pneg %p268
      // Predicated region
      $region49: #{tpu_custom_call.1} parent=5 // pred_check
        _
      $region50: #{tpu_custom_call.1} parent=5 // pred_check_branch
        %271 = sbr.rel (%p268) target = $region52
      $region51: #{tpu_custom_call.1} parent=5 // pred_region
        %s272 = ssub.s32 %s18, 1
        %s273 = smul.u32 4, %s23
        %p274 = scmp.lt.s32.totalorder %s273, 7
        %s275 = scalar_select %p274, %s273, 7
        %s276 = smul.addr %s275, 4
        %s277 = scalar_lea.vmem %s0, %s276
        %p278 = pneg %p44
        %p279 = pneg %p41
        %p280 = pneg %p65
        %p281 = pneg %p62
        %p282 = pneg %p86
        %p283 = pneg %p83
        %p284 = pneg %p107
        %p285 = pneg %p104
        %p286 = pneg %p128
        %p287 = pneg %p125
        %p288 = pneg %p149
        %p289 = pneg %p146
        %p290 = pneg %p170
        %p291 = pneg %p167
        %p292 = pneg %p191
        %p293 = pneg %p188
        %p294 = pneg %p217
        %p295 = pneg %p214
        %s296 = sand.u32 %s204, 1
        %s297 = scalar_lea.sflag [#allocation4], %s296
        %s298 = sand.u32 %s204, 1
        %s299 = smul.addr %s298, 4
        %s300 = scalar_lea.vmem [#allocation3], %s299
        %s301 = smul.u32 4, %s23
        %p302 = scmp.lt.s32.totalorder %s301, 7
        %s303 = scalar_select %p302, %s301, 7
        %s304 = smul.addr %s303, 4
        %s305 = scalar_lea.vmem %s0, %s304
        %s306 = smul.u32 4, %s23
        %s307 = smul.u32 4, %s23
        %v308 = vlaneseq
        %v309 = vshrl.u32 %v308, 7
        %v310 = vadd.s32 %v309, 8
        %v311 = vadd.s32 %v309, 16
        %v312 = vadd.s32 %v309, 24
        %v313 = vadd.s32 %v309, 32
        %v314 = vadd.s32 %v309, 40
        %v315 = vadd.s32 %v309, 48
        %v316 = vadd.s32 %v309, 56
        %v317 = vadd.s32 %v309, 64
        %v318 = vadd.s32 %v309, 72
        %v319 = vadd.s32 %v309, 80
        %v320 = vadd.s32 %v309, 88
        %v321 = vadd.s32 %v309, 96
        %v322 = vadd.s32 %v309, 104
        %v323 = vadd.s32 %v309, 112
        %v324 = vadd.s32 %v309, 120
        %v325 = vld [vmem:[%s305] ss:$4 sm:$0xf]
        %v326 = vlaneseq
        %v327 = vshrl.u32 %v326, 7
        %v328 = vsub.s32 0, %v327
        %v329 = vrot.slane %v325, %v328
        %v330 = vlaneseq
        %v331 = vshrl.u32 %v330, 7
        %v332 = vsub.s32 1, %v331
        %v333 = vrot.slane %v325, %v332
        %v334 = vlaneseq
        %v335 = vshrl.u32 %v334, 7
        %v336 = vsub.s32 2, %v335
        %v337 = vrot.slane %v325, %v336
        %v338 = vlaneseq
        %v339 = vshrl.u32 %v338, 7
        %v340 = vsub.s32 3, %v339
        %v341 = vrot.slane %v325, %v340
        %vm342 = vcmp.eq.s32.totalorder %v309, %v329
        %vm343 = vcmp.eq.s32.totalorder %v309, %v333
        %vm344 = vcmp.eq.s32.totalorder %v309, %v337
        %vm345 = vcmp.eq.s32.totalorder %v309, %v341
        %vm346 = vcmp.eq.s32.totalorder %v310, %v329
        %vm347 = vcmp.eq.s32.totalorder %v310, %v333
        %vm348 = vcmp.eq.s32.totalorder %v310, %v337
        %vm349 = vcmp.eq.s32.totalorder %v310, %v341
        %vm350 = vcmp.eq.s32.totalorder %v311, %v329
        %vm351 = vcmp.eq.s32.totalorder %v311, %v333
        %vm352 = vcmp.eq.s32.totalorder %v311, %v337
        %vm353 = vcmp.eq.s32.totalorder %v311, %v341
        %vm354 = vcmp.eq.s32.totalorder %v312, %v329
        %vm355 = vcmp.eq.s32.totalorder %v312, %v333
        %vm356 = vcmp.eq.s32.totalorder %v312, %v337
        %vm357 = vcmp.eq.s32.totalorder %v312, %v341
        %vm358 = vcmp.eq.s32.totalorder %v313, %v329
        %vm359 = vcmp.eq.s32.totalorder %v313, %v333
        %vm360 = vcmp.eq.s32.totalorder %v313, %v337
        %vm361 = vcmp.eq.s32.totalorder %v313, %v341
        %vm362 = vcmp.eq.s32.totalorder %v314, %v329
        %vm363 = vcmp.eq.s32.totalorder %v314, %v333
        %vm364 = vcmp.eq.s32.totalorder %v314, %v337
        %vm365 = vcmp.eq.s32.totalorder %v314, %v341
        %vm366 = vcmp.eq.s32.totalorder %v315, %v329
        %vm367 = vcmp.eq.s32.totalorder %v315, %v333
        %vm368 = vcmp.eq.s32.totalorder %v315, %v337
        %vm369 = vcmp.eq.s32.totalorder %v315, %v341
        %vm370 = vcmp.eq.s32.totalorder %v316, %v329
        %vm371 = vcmp.eq.s32.totalorder %v316, %v333
        %vm372 = vcmp.eq.s32.totalorder %v316, %v337
        %vm373 = vcmp.eq.s32.totalorder %v316, %v341
        %vm374 = vcmp.eq.s32.totalorder %v317, %v329
        %vm375 = vcmp.eq.s32.totalorder %v317, %v333
        %vm376 = vcmp.eq.s32.totalorder %v317, %v337
        %vm377 = vcmp.eq.s32.totalorder %v317, %v341
        %vm378 = vcmp.eq.s32.totalorder %v318, %v329
        %vm379 = vcmp.eq.s32.totalorder %v318, %v333
        %vm380 = vcmp.eq.s32.totalorder %v318, %v337
        %vm381 = vcmp.eq.s32.totalorder %v318, %v341
        %vm382 = vcmp.eq.s32.totalorder %v319, %v329
        %vm383 = vcmp.eq.s32.totalorder %v319, %v333
        %vm384 = vcmp.eq.s32.totalorder %v319, %v337
        %vm385 = vcmp.eq.s32.totalorder %v319, %v341
        %vm386 = vcmp.eq.s32.totalorder %v320, %v329
        %vm387 = vcmp.eq.s32.totalorder %v320, %v333
        %vm388 = vcmp.eq.s32.totalorder %v320, %v337
        %vm389 = vcmp.eq.s32.totalorder %v320, %v341
        %vm390 = vcmp.eq.s32.totalorder %v321, %v329
        %vm391 = vcmp.eq.s32.totalorder %v321, %v333
        %vm392 = vcmp.eq.s32.totalorder %v321, %v337
        %vm393 = vcmp.eq.s32.totalorder %v321, %v341
        %vm394 = vcmp.eq.s32.totalorder %v322, %v329
        %vm395 = vcmp.eq.s32.totalorder %v322, %v333
        %vm396 = vcmp.eq.s32.totalorder %v322, %v337
        %vm397 = vcmp.eq.s32.totalorder %v322, %v341
        %vm398 = vcmp.eq.s32.totalorder %v323, %v329
        %vm399 = vcmp.eq.s32.totalorder %v323, %v333
        %vm400 = vcmp.eq.s32.totalorder %v323, %v337
        %vm401 = vcmp.eq.s32.totalorder %v323, %v341
        %vm402 = vcmp.eq.s32.totalorder %v324, %v329
        %vm403 = vcmp.eq.s32.totalorder %v324, %v333
        %vm404 = vcmp.eq.s32.totalorder %v324, %v337
        %vm405 = vcmp.eq.s32.totalorder %v324, %v341
        %s406 = scalar_lea.vmem %s305, 1
        %v407 = vld [vmem:[%s406] ss:$4 sm:$0xf]
        %v408 = vlaneseq
        %v409 = vshrl.u32 %v408, 7
        %v410 = vsub.s32 0, %v409
        %v411 = vrot.slane %v407, %v410
        %v412 = vlaneseq
        %v413 = vshrl.u32 %v412, 7
        %v414 = vsub.s32 1, %v413
        %v415 = vrot.slane %v407, %v414
        %v416 = vlaneseq
        %v417 = vshrl.u32 %v416, 7
        %v418 = vsub.s32 2, %v417
        %v419 = vrot.slane %v407, %v418
        %v420 = vlaneseq
        %v421 = vshrl.u32 %v420, 7
        %v422 = vsub.s32 3, %v421
        %v423 = vrot.slane %v407, %v422
        %vm424 = vcmp.eq.s32.totalorder %v309, %v411
        %vm425 = vcmp.eq.s32.totalorder %v309, %v415
        %vm426 = vcmp.eq.s32.totalorder %v309, %v419
        %vm427 = vcmp.eq.s32.totalorder %v309, %v423
        %vm428 = vcmp.eq.s32.totalorder %v310, %v411
        %vm429 = vcmp.eq.s32.totalorder %v310, %v415
        %vm430 = vcmp.eq.s32.totalorder %v310, %v419
        %vm431 = vcmp.eq.s32.totalorder %v310, %v423
        %vm432 = vcmp.eq.s32.totalorder %v311, %v411
        %vm433 = vcmp.eq.s32.totalorder %v311, %v415
        %vm434 = vcmp.eq.s32.totalorder %v311, %v419
        %vm435 = vcmp.eq.s32.totalorder %v311, %v423
        %vm436 = vcmp.eq.s32.totalorder %v312, %v411
        %vm437 = vcmp.eq.s32.totalorder %v312, %v415
        %vm438 = vcmp.eq.s32.totalorder %v312, %v419
        %vm439 = vcmp.eq.s32.totalorder %v312, %v423
        %vm440 = vcmp.eq.s32.totalorder %v313, %v411
        %vm441 = vcmp.eq.s32.totalorder %v313, %v415
        %vm442 = vcmp.eq.s32.totalorder %v313, %v419
        %vm443 = vcmp.eq.s32.totalorder %v313, %v423
        %vm444 = vcmp.eq.s32.totalorder %v314, %v411
        %vm445 = vcmp.eq.s32.totalorder %v314, %v415
        %vm446 = vcmp.eq.s32.totalorder %v314, %v419
        %vm447 = vcmp.eq.s32.totalorder %v314, %v423
        %vm448 = vcmp.eq.s32.totalorder %v315, %v411
        %vm449 = vcmp.eq.s32.totalorder %v315, %v415
        %vm450 = vcmp.eq.s32.totalorder %v315, %v419
        %vm451 = vcmp.eq.s32.totalorder %v315, %v423
        %vm452 = vcmp.eq.s32.totalorder %v316, %v411
        %vm453 = vcmp.eq.s32.totalorder %v316, %v415
        %vm454 = vcmp.eq.s32.totalorder %v316, %v419
        %vm455 = vcmp.eq.s32.totalorder %v316, %v423
        %vm456 = vcmp.eq.s32.totalorder %v317, %v411
        %vm457 = vcmp.eq.s32.totalorder %v317, %v415
        %vm458 = vcmp.eq.s32.totalorder %v317, %v419
        %vm459 = vcmp.eq.s32.totalorder %v317, %v423
        %vm460 = vcmp.eq.s32.totalorder %v318, %v411
        %vm461 = vcmp.eq.s32.totalorder %v318, %v415
        %vm462 = vcmp.eq.s32.totalorder %v318, %v419
        %vm463 = vcmp.eq.s32.totalorder %v318, %v423
        %vm464 = vcmp.eq.s32.totalorder %v319, %v411
        %vm465 = vcmp.eq.s32.totalorder %v319, %v415
        %vm466 = vcmp.eq.s32.totalorder %v319, %v419
        %vm467 = vcmp.eq.s32.totalorder %v319, %v423
        %vm468 = vcmp.eq.s32.totalorder %v320, %v411
        %vm469 = vcmp.eq.s32.totalorder %v320, %v415
        %vm470 = vcmp.eq.s32.totalorder %v320, %v419
        %vm471 = vcmp.eq.s32.totalorder %v320, %v423
        %vm472 = vcmp.eq.s32.totalorder %v321, %v411
        %vm473 = vcmp.eq.s32.totalorder %v321, %v415
        %vm474 = vcmp.eq.s32.totalorder %v321, %v419
        %vm475 = vcmp.eq.s32.totalorder %v321, %v423
        %vm476 = vcmp.eq.s32.totalorder %v322, %v411
        %vm477 = vcmp.eq.s32.totalorder %v322, %v415
        %vm478 = vcmp.eq.s32.totalorder %v322, %v419
        %vm479 = vcmp.eq.s32.totalorder %v322, %v423
        %vm480 = vcmp.eq.s32.totalorder %v323, %v411
        %vm481 = vcmp.eq.s32.totalorder %v323, %v415
        %vm482 = vcmp.eq.s32.totalorder %v323, %v419
        %vm483 = vcmp.eq.s32.totalorder %v323, %v423
        %vm484 = vcmp.eq.s32.totalorder %v324, %v411
        %vm485 = vcmp.eq.s32.totalorder %v324, %v415
        %vm486 = vcmp.eq.s32.totalorder %v324, %v419
        %vm487 = vcmp.eq.s32.totalorder %v324, %v423
        %vm488 = vmor %vm342, %vm424
        %vm489 = vmor %vm343, %vm425
        %vm490 = vmor %vm344, %vm426
        %vm491 = vmor %vm345, %vm427
        %vm492 = vmor %vm346, %vm428
        %vm493 = vmor %vm347, %vm429
        %vm494 = vmor %vm348, %vm430
        %vm495 = vmor %vm349, %vm431
        %vm496 = vmor %vm350, %vm432
        %vm497 = vmor %vm351, %vm433
        %vm498 = vmor %vm352, %vm434
        %vm499 = vmor %vm353, %vm435
        %vm500 = vmor %vm354, %vm436
        %vm501 = vmor %vm355, %vm437
        %vm502 = vmor %vm356, %vm438
        %vm503 = vmor %vm357, %vm439
        %vm504 = vmor %vm358, %vm440
        %vm505 = vmor %vm359, %vm441
        %vm506 = vmor %vm360, %vm442
        %vm507 = vmor %vm361, %vm443
        %vm508 = vmor %vm362, %vm444
        %vm509 = vmor %vm363, %vm445
        %vm510 = vmor %vm364, %vm446
        %vm511 = vmor %vm365, %vm447
        %vm512 = vmor %vm366, %vm448
        %vm513 = vmor %vm367, %vm449
        %vm514 = vmor %vm368, %vm450
        %vm515 = vmor %vm369, %vm451
        %vm516 = vmor %vm370, %vm452
        %vm517 = vmor %vm371, %vm453
        %vm518 = vmor %vm372, %vm454
        %vm519 = vmor %vm373, %vm455
        %vm520 = vmor %vm374, %vm456
        %vm521 = vmor %vm375, %vm457
        %vm522 = vmor %vm376, %vm458
        %vm523 = vmor %vm377, %vm459
        %vm524 = vmor %vm378, %vm460
        %vm525 = vmor %vm379, %vm461
        %vm526 = vmor %vm380, %vm462
        %vm527 = vmor %vm381, %vm463
        %vm528 = vmor %vm382, %vm464
        %vm529 = vmor %vm383, %vm465
        %vm530 = vmor %vm384, %vm466
        %vm531 = vmor %vm385, %vm467
        %vm532 = vmor %vm386, %vm468
        %vm533 = vmor %vm387, %vm469
        %vm534 = vmor %vm388, %vm470
        %vm535 = vmor %vm389, %vm471
        %vm536 = vmor %vm390, %vm472
        %vm537 = vmor %vm391, %vm473
        %vm538 = vmor %vm392, %vm474
        %vm539 = vmor %vm393, %vm475
        %vm540 = vmor %vm394, %vm476
        %vm541 = vmor %vm395, %vm477
        %vm542 = vmor %vm396, %vm478
        %vm543 = vmor %vm397, %vm479
        %vm544 = vmor %vm398, %vm480
        %vm545 = vmor %vm399, %vm481
        %vm546 = vmor %vm400, %vm482
        %vm547 = vmor %vm401, %vm483
        %vm548 = vmor %vm402, %vm484
        %vm549 = vmor %vm403, %vm485
        %vm550 = vmor %vm404, %vm486
        %vm551 = vmor %vm405, %vm487
        %s552 = scalar_lea.vmem %s305, 2
        %v553 = vld [vmem:[%s552] ss:$4 sm:$0xf]
        %v554 = vlaneseq
        %v555 = vshrl.u32 %v554, 7
        %v556 = vsub.s32 0, %v555
        %v557 = vrot.slane %v553, %v556
        %v558 = vlaneseq
        %v559 = vshrl.u32 %v558, 7
        %v560 = vsub.s32 1, %v559
        %v561 = vrot.slane %v553, %v560
        %v562 = vlaneseq
        %v563 = vshrl.u32 %v562, 7
        %v564 = vsub.s32 2, %v563
        %v565 = vrot.slane %v553, %v564
        %v566 = vlaneseq
        %v567 = vshrl.u32 %v566, 7
        %v568 = vsub.s32 3, %v567
        %v569 = vrot.slane %v553, %v568
        %vm570 = vcmp.eq.s32.totalorder %v309, %v557
        %vm571 = vcmp.eq.s32.totalorder %v309, %v561
        %vm572 = vcmp.eq.s32.totalorder %v309, %v565
        %vm573 = vcmp.eq.s32.totalorder %v309, %v569
        %vm574 = vcmp.eq.s32.totalorder %v310, %v557
        %vm575 = vcmp.eq.s32.totalorder %v310, %v561
        %vm576 = vcmp.eq.s32.totalorder %v310, %v565
        %vm577 = vcmp.eq.s32.totalorder %v310, %v569
        %vm578 = vcmp.eq.s32.totalorder %v311, %v557
        %vm579 = vcmp.eq.s32.totalorder %v311, %v561
        %vm580 = vcmp.eq.s32.totalorder %v311, %v565
        %vm581 = vcmp.eq.s32.totalorder %v311, %v569
        %vm582 = vcmp.eq.s32.totalorder %v312, %v557
        %vm583 = vcmp.eq.s32.totalorder %v312, %v561
        %vm584 = vcmp.eq.s32.totalorder %v312, %v565
        %vm585 = vcmp.eq.s32.totalorder %v312, %v569
        %vm586 = vcmp.eq.s32.totalorder %v313, %v557
        %vm587 = vcmp.eq.s32.totalorder %v313, %v561
        %vm588 = vcmp.eq.s32.totalorder %v313, %v565
        %vm589 = vcmp.eq.s32.totalorder %v313, %v569
        %vm590 = vcmp.eq.s32.totalorder %v314, %v557
        %vm591 = vcmp.eq.s32.totalorder %v314, %v561
        %vm592 = vcmp.eq.s32.totalorder %v314, %v565
        %vm593 = vcmp.eq.s32.totalorder %v314, %v569
        %vm594 = vcmp.eq.s32.totalorder %v315, %v557
        %vm595 = vcmp.eq.s32.totalorder %v315, %v561
        %vm596 = vcmp.eq.s32.totalorder %v315, %v565
        %vm597 = vcmp.eq.s32.totalorder %v315, %v569
        %vm598 = vcmp.eq.s32.totalorder %v316, %v557
        %vm599 = vcmp.eq.s32.totalorder %v316, %v561
        %vm600 = vcmp.eq.s32.totalorder %v316, %v565
        %vm601 = vcmp.eq.s32.totalorder %v316, %v569
        %vm602 = vcmp.eq.s32.totalorder %v317, %v557
        %vm603 = vcmp.eq.s32.totalorder %v317, %v561
        %vm604 = vcmp.eq.s32.totalorder %v317, %v565
        %vm605 = vcmp.eq.s32.totalorder %v317, %v569
        %vm606 = vcmp.eq.s32.totalorder %v318, %v557
        %vm607 = vcmp.eq.s32.totalorder %v318, %v561
        %vm608 = vcmp.eq.s32.totalorder %v318, %v565
        %vm609 = vcmp.eq.s32.totalorder %v318, %v569
        %vm610 = vcmp.eq.s32.totalorder %v319, %v557
        %vm611 = vcmp.eq.s32.totalorder %v319, %v561
        %vm612 = vcmp.eq.s32.totalorder %v319, %v565
        %vm613 = vcmp.eq.s32.totalorder %v319, %v569
        %vm614 = vcmp.eq.s32.totalorder %v320, %v557
        %vm615 = vcmp.eq.s32.totalorder %v320, %v561
        %vm616 = vcmp.eq.s32.totalorder %v320, %v565
        %vm617 = vcmp.eq.s32.totalorder %v320, %v569
        %vm618 = vcmp.eq.s32.totalorder %v321, %v557
        %vm619 = vcmp.eq.s32.totalorder %v321, %v561
        %vm620 = vcmp.eq.s32.totalorder %v321, %v565
        %vm621 = vcmp.eq.s32.totalorder %v321, %v569
        %vm622 = vcmp.eq.s32.totalorder %v322, %v557
        %vm623 = vcmp.eq.s32.totalorder %v322, %v561
        %vm624 = vcmp.eq.s32.totalorder %v322, %v565
        %vm625 = vcmp.eq.s32.totalorder %v322, %v569
        %vm626 = vcmp.eq.s32.totalorder %v323, %v557
        %vm627 = vcmp.eq.s32.totalorder %v323, %v561
        %vm628 = vcmp.eq.s32.totalorder %v323, %v565
        %vm629 = vcmp.eq.s32.totalorder %v323, %v569
        %vm630 = vcmp.eq.s32.totalorder %v324, %v557
        %vm631 = vcmp.eq.s32.totalorder %v324, %v561
        %vm632 = vcmp.eq.s32.totalorder %v324, %v565
        %vm633 = vcmp.eq.s32.totalorder %v324, %v569
        %vm634 = vmor %vm488, %vm570
        %vm635 = vmor %vm489, %vm571
        %vm636 = vmor %vm490, %vm572
        %vm637 = vmor %vm491, %vm573
        %vm638 = vmor %vm492, %vm574
        %vm639 = vmor %vm493, %vm575
        %vm640 = vmor %vm494, %vm576
        %vm641 = vmor %vm495, %vm577
        %vm642 = vmor %vm496, %vm578
        %vm643 = vmor %vm497, %vm579
        %vm644 = vmor %vm498, %vm580
        %vm645 = vmor %vm499, %vm581
        %vm646 = vmor %vm500, %vm582
        %vm647 = vmor %vm501, %vm583
        %vm648 = vmor %vm502, %vm584
        %vm649 = vmor %vm503, %vm585
        %vm650 = vmor %vm504, %vm586
        %vm651 = vmor %vm505, %vm587
        %vm652 = vmor %vm506, %vm588
        %vm653 = vmor %vm507, %vm589
        %vm654 = vmor %vm508, %vm590
        %vm655 = vmor %vm509, %vm591
        %vm656 = vmor %vm510, %vm592
        %vm657 = vmor %vm511, %vm593
        %vm658 = vmor %vm512, %vm594
        %vm659 = vmor %vm513, %vm595
        %vm660 = vmor %vm514, %vm596
        %vm661 = vmor %vm515, %vm597
        %vm662 = vmor %vm516, %vm598
        %vm663 = vmor %vm517, %vm599
        %vm664 = vmor %vm518, %vm600
        %vm665 = vmor %vm519, %vm601
        %vm666 = vmor %vm520, %vm602
        %vm667 = vmor %vm521, %vm603
        %vm668 = vmor %vm522, %vm604
        %vm669 = vmor %vm523, %vm605
        %vm670 = vmor %vm524, %vm606
        %vm671 = vmor %vm525, %vm607
        %vm672 = vmor %vm526, %vm608
        %vm673 = vmor %vm527, %vm609
        %vm674 = vmor %vm528, %vm610
        %vm675 = vmor %vm529, %vm611
        %vm676 = vmor %vm530, %vm612
        %vm677 = vmor %vm531, %vm613
        %vm678 = vmor %vm532, %vm614
        %vm679 = vmor %vm533, %vm615
        %vm680 = vmor %vm534, %vm616
        %vm681 = vmor %vm535, %vm617
        %vm682 = vmor %vm536, %vm618
        %vm683 = vmor %vm537, %vm619
        %vm684 = vmor %vm538, %vm620
        %vm685 = vmor %vm539, %vm621
        %vm686 = vmor %vm540, %vm622
        %vm687 = vmor %vm541, %vm623
        %vm688 = vmor %vm542, %vm624
        %vm689 = vmor %vm543, %vm625
        %vm690 = vmor %vm544, %vm626
        %vm691 = vmor %vm545, %vm627
        %vm692 = vmor %vm546, %vm628
        %vm693 = vmor %vm547, %vm629
        %vm694 = vmor %vm548, %vm630
        %vm695 = vmor %vm549, %vm631
        %vm696 = vmor %vm550, %vm632
        %vm697 = vmor %vm551, %vm633
        %s698 = scalar_lea.vmem %s305, 3
        %v699 = vld [vmem:[%s698] ss:$4 sm:$0xf]
        %v700 = vlaneseq
        %v701 = vshrl.u32 %v700, 7
        %v702 = vsub.s32 0, %v701
        %v703 = vrot.slane %v699, %v702
        %v704 = vlaneseq
        %v705 = vshrl.u32 %v704, 7
        %v706 = vsub.s32 1, %v705
        %v707 = vrot.slane %v699, %v706
        %v708 = vlaneseq
        %v709 = vshrl.u32 %v708, 7
        %v710 = vsub.s32 2, %v709
        %v711 = vrot.slane %v699, %v710
        %v712 = vlaneseq
        %v713 = vshrl.u32 %v712, 7
        %v714 = vsub.s32 3, %v713
        %v715 = vrot.slane %v699, %v714
        %vm716 = vcmp.eq.s32.totalorder %v309, %v703
        %vm717 = vcmp.eq.s32.totalorder %v309, %v707
        %vm718 = vcmp.eq.s32.totalorder %v309, %v711
        %vm719 = vcmp.eq.s32.totalorder %v309, %v715
        %vm720 = vcmp.eq.s32.totalorder %v310, %v703
        %vm721 = vcmp.eq.s32.totalorder %v310, %v707
        %vm722 = vcmp.eq.s32.totalorder %v310, %v711
        %vm723 = vcmp.eq.s32.totalorder %v310, %v715
        %vm724 = vcmp.eq.s32.totalorder %v311, %v703
        %vm725 = vcmp.eq.s32.totalorder %v311, %v707
        %vm726 = vcmp.eq.s32.totalorder %v311, %v711
        %vm727 = vcmp.eq.s32.totalorder %v311, %v715
        %vm728 = vcmp.eq.s32.totalorder %v312, %v703
        %vm729 = vcmp.eq.s32.totalorder %v312, %v707
        %vm730 = vcmp.eq.s32.totalorder %v312, %v711
        %vm731 = vcmp.eq.s32.totalorder %v312, %v715
        %vm732 = vcmp.eq.s32.totalorder %v313, %v703
        %vm733 = vcmp.eq.s32.totalorder %v313, %v707
        %vm734 = vcmp.eq.s32.totalorder %v313, %v711
        %vm735 = vcmp.eq.s32.totalorder %v313, %v715
        %vm736 = vcmp.eq.s32.totalorder %v314, %v703
        %vm737 = vcmp.eq.s32.totalorder %v314, %v707
        %vm738 = vcmp.eq.s32.totalorder %v314, %v711
        %vm739 = vcmp.eq.s32.totalorder %v314, %v715
        %vm740 = vcmp.eq.s32.totalorder %v315, %v703
        %vm741 = vcmp.eq.s32.totalorder %v315, %v707
        %vm742 = vcmp.eq.s32.totalorder %v315, %v711
        %vm743 = vcmp.eq.s32.totalorder %v315, %v715
        %vm744 = vcmp.eq.s32.totalorder %v316, %v703
        %vm745 = vcmp.eq.s32.totalorder %v316, %v707
        %vm746 = vcmp.eq.s32.totalorder %v316, %v711
        %vm747 = vcmp.eq.s32.totalorder %v316, %v715
        %vm748 = vcmp.eq.s32.totalorder %v317, %v703
        %vm749 = vcmp.eq.s32.totalorder %v317, %v707
        %vm750 = vcmp.eq.s32.totalorder %v317, %v711
        %vm751 = vcmp.eq.s32.totalorder %v317, %v715
        %vm752 = vcmp.eq.s32.totalorder %v318, %v703
        %vm753 = vcmp.eq.s32.totalorder %v318, %v707
        %vm754 = vcmp.eq.s32.totalorder %v318, %v711
        %vm755 = vcmp.eq.s32.totalorder %v318, %v715
        %vm756 = vcmp.eq.s32.totalorder %v319, %v703
        %vm757 = vcmp.eq.s32.totalorder %v319, %v707
        %vm758 = vcmp.eq.s32.totalorder %v319, %v711
        %vm759 = vcmp.eq.s32.totalorder %v319, %v715
        %vm760 = vcmp.eq.s32.totalorder %v320, %v703
        %vm761 = vcmp.eq.s32.totalorder %v320, %v707
        %vm762 = vcmp.eq.s32.totalorder %v320, %v711
        %vm763 = vcmp.eq.s32.totalorder %v320, %v715
        %vm764 = vcmp.eq.s32.totalorder %v321, %v703
        %vm765 = vcmp.eq.s32.totalorder %v321, %v707
        %vm766 = vcmp.eq.s32.totalorder %v321, %v711
        %vm767 = vcmp.eq.s32.totalorder %v321, %v715
        %vm768 = vcmp.eq.s32.totalorder %v322, %v703
        %vm769 = vcmp.eq.s32.totalorder %v322, %v707
        %vm770 = vcmp.eq.s32.totalorder %v322, %v711
        %vm771 = vcmp.eq.s32.totalorder %v322, %v715
        %vm772 = vcmp.eq.s32.totalorder %v323, %v703
        %vm773 = vcmp.eq.s32.totalorder %v323, %v707
        %vm774 = vcmp.eq.s32.totalorder %v323, %v711
        %vm775 = vcmp.eq.s32.totalorder %v323, %v715
        %vm776 = vcmp.eq.s32.totalorder %v324, %v703
        %vm777 = vcmp.eq.s32.totalorder %v324, %v707
        %vm778 = vcmp.eq.s32.totalorder %v324, %v711
        %vm779 = vcmp.eq.s32.totalorder %v324, %v715
        %vm780 = vmor %vm634, %vm716
        %vm781 = vmor %vm635, %vm717
        %vm782 = vmor %vm636, %vm718
        %vm783 = vmor %vm637, %vm719
        %vm784 = vmor %vm638, %vm720
        %vm785 = vmor %vm639, %vm721
        %vm786 = vmor %vm640, %vm722
        %vm787 = vmor %vm641, %vm723
        %vm788 = vmor %vm642, %vm724
        %vm789 = vmor %vm643, %vm725
        %vm790 = vmor %vm644, %vm726
        %vm791 = vmor %vm645, %vm727
        %vm792 = vmor %vm646, %vm728
        %vm793 = vmor %vm647, %vm729
        %vm794 = vmor %vm648, %vm730
        %vm795 = vmor %vm649, %vm731
        %vm796 = vmor %vm650, %vm732
        %vm797 = vmor %vm651, %vm733
        %vm798 = vmor %vm652, %vm734
        %vm799 = vmor %vm653, %vm735
        %vm800 = vmor %vm654, %vm736
        %vm801 = vmor %vm655, %vm737
        %vm802 = vmor %vm656, %vm738
        %vm803 = vmor %vm657, %vm739
        %vm804 = vmor %vm658, %vm740
        %vm805 = vmor %vm659, %vm741
        %vm806 = vmor %vm660, %vm742
        %vm807 = vmor %vm661, %vm743
        %vm808 = vmor %vm662, %vm744
        %vm809 = vmor %vm663, %vm745
        %vm810 = vmor %vm664, %vm746
        %vm811 = vmor %vm665, %vm747
        %vm812 = vmor %vm666, %vm748
        %vm813 = vmor %vm667, %vm749
        %vm814 = vmor %vm668, %vm750
        %vm815 = vmor %vm669, %vm751
        %vm816 = vmor %vm670, %vm752
        %vm817 = vmor %vm671, %vm753
        %vm818 = vmor %vm672, %vm754
        %vm819 = vmor %vm673, %vm755
        %vm820 = vmor %vm674, %vm756
        %vm821 = vmor %vm675, %vm757
        %vm822 = vmor %vm676, %vm758
        %vm823 = vmor %vm677, %vm759
        %vm824 = vmor %vm678, %vm760
        %vm825 = vmor %vm679, %vm761
        %vm826 = vmor %vm680, %vm762
        %vm827 = vmor %vm681, %vm763
        %vm828 = vmor %vm682, %vm764
        %vm829 = vmor %vm683, %vm765
        %vm830 = vmor %vm684, %vm766
        %vm831 = vmor %vm685, %vm767
        %vm832 = vmor %vm686, %vm768
        %vm833 = vmor %vm687, %vm769
        %vm834 = vmor %vm688, %vm770
        %vm835 = vmor %vm689, %vm771
        %vm836 = vmor %vm690, %vm772
        %vm837 = vmor %vm691, %vm773
        %vm838 = vmor %vm692, %vm774
        %vm839 = vmor %vm693, %vm775
        %vm840 = vmor %vm694, %vm776
        %vm841 = vmor %vm695, %vm777
        %vm842 = vmor %vm696, %vm778
        %vm843 = vmor %vm697, %vm779
        %v844 = vsel %vm780, 1, 0
        %v845 = vsel %vm781, 1, 0
        %v846 = vsel %vm782, 1, 0
        %v847 = vsel %vm783, 1, 0
        %v848 = vsel %vm784, 1, 0
        %v849 = vsel %vm785, 1, 0
        %v850 = vsel %vm786, 1, 0
        %v851 = vsel %vm787, 1, 0
        %v852 = vsel %vm788, 1, 0
        %v853 = vsel %vm789, 1, 0
        %v854 = vsel %vm790, 1, 0
        %v855 = vsel %vm791, 1, 0
        %v856 = vsel %vm792, 1, 0
        %v857 = vsel %vm793, 1, 0
        %v858 = vsel %vm794, 1, 0
        %v859 = vsel %vm795, 1, 0
        %v860 = vsel %vm796, 1, 0
        %v861 = vsel %vm797, 1, 0
        %v862 = vsel %vm798, 1, 0
        %v863 = vsel %vm799, 1, 0
        %v864 = vsel %vm800, 1, 0
        %v865 = vsel %vm801, 1, 0
        %v866 = vsel %vm802, 1, 0
        %v867 = vsel %vm803, 1, 0
        %v868 = vsel %vm804, 1, 0
        %v869 = vsel %vm805, 1, 0
        %v870 = vsel %vm806, 1, 0
        %v871 = vsel %vm807, 1, 0
        %v872 = vsel %vm808, 1, 0
        %v873 = vsel %vm809, 1, 0
        %v874 = vsel %vm810, 1, 0
        %v875 = vsel %vm811, 1, 0
        %v876 = vsel %vm812, 1, 0
        %v877 = vsel %vm813, 1, 0
        %v878 = vsel %vm814, 1, 0
        %v879 = vsel %vm815, 1, 0
        %v880 = vsel %vm816, 1, 0
        %v881 = vsel %vm817, 1, 0
        %v882 = vsel %vm818, 1, 0
        %v883 = vsel %vm819, 1, 0
        %v884 = vsel %vm820, 1, 0
        %v885 = vsel %vm821, 1, 0
        %v886 = vsel %vm822, 1, 0
        %v887 = vsel %vm823, 1, 0
        %v888 = vsel %vm824, 1, 0
        %v889 = vsel %vm825, 1, 0
        %v890 = vsel %vm826, 1, 0
        %v891 = vsel %vm827, 1, 0
        %v892 = vsel %vm828, 1, 0
        %v893 = vsel %vm829, 1, 0
        %v894 = vsel %vm830, 1, 0
        %v895 = vsel %vm831, 1, 0
        %v896 = vsel %vm832, 1, 0
        %v897 = vsel %vm833, 1, 0
        %v898 = vsel %vm834, 1, 0
        %v899 = vsel %vm835, 1, 0
        %v900 = vsel %vm836, 1, 0
        %v901 = vsel %vm837, 1, 0
        %v902 = vsel %vm838, 1, 0
        %v903 = vsel %vm839, 1, 0
        %v904 = vsel %vm840, 1, 0
        %v905 = vsel %vm841, 1, 0
        %v906 = vsel %vm842, 1, 0
        %v907 = vsel %vm843, 1, 0
        %v908 = vcvt.s32.f32 %v844
        %v909 = vcvt.s32.f32 %v845
        %v910 = vcvt.s32.f32 %v846
        %v911 = vcvt.s32.f32 %v847
        %v912 = vcvt.s32.f32 %v848
        %v913 = vcvt.s32.f32 %v849
        %v914 = vcvt.s32.f32 %v850
        %v915 = vcvt.s32.f32 %v851
        %v916 = vcvt.s32.f32 %v852
        %v917 = vcvt.s32.f32 %v853
        %v918 = vcvt.s32.f32 %v854
        %v919 = vcvt.s32.f32 %v855
        %v920 = vcvt.s32.f32 %v856
        %v921 = vcvt.s32.f32 %v857
        %v922 = vcvt.s32.f32 %v858
        %v923 = vcvt.s32.f32 %v859
        %v924 = vcvt.s32.f32 %v860
        %v925 = vcvt.s32.f32 %v861
        %v926 = vcvt.s32.f32 %v862
        %v927 = vcvt.s32.f32 %v863
        %v928 = vcvt.s32.f32 %v864
        %v929 = vcvt.s32.f32 %v865
        %v930 = vcvt.s32.f32 %v866
        %v931 = vcvt.s32.f32 %v867
        %v932 = vcvt.s32.f32 %v868
        %v933 = vcvt.s32.f32 %v869
        %v934 = vcvt.s32.f32 %v870
        %v935 = vcvt.s32.f32 %v871
        %v936 = vcvt.s32.f32 %v872
        %v937 = vcvt.s32.f32 %v873
        %v938 = vcvt.s32.f32 %v874
        %v939 = vcvt.s32.f32 %v875
        %v940 = vcvt.s32.f32 %v876
        %v941 = vcvt.s32.f32 %v877
        %v942 = vcvt.s32.f32 %v878
        %v943 = vcvt.s32.f32 %v879
        %v944 = vcvt.s32.f32 %v880
        %v945 = vcvt.s32.f32 %v881
        %v946 = vcvt.s32.f32 %v882
        %v947 = vcvt.s32.f32 %v883
        %v948 = vcvt.s32.f32 %v884
        %v949 = vcvt.s32.f32 %v885
        %v950 = vcvt.s32.f32 %v886
        %v951 = vcvt.s32.f32 %v887
        %v952 = vcvt.s32.f32 %v888
        %v953 = vcvt.s32.f32 %v889
        %v954 = vcvt.s32.f32 %v890
        %v955 = vcvt.s32.f32 %v891
        %v956 = vcvt.s32.f32 %v892
        %v957 = vcvt.s32.f32 %v893
        %v958 = vcvt.s32.f32 %v894
        %v959 = vcvt.s32.f32 %v895
        %v960 = vcvt.s32.f32 %v896
        %v961 = vcvt.s32.f32 %v897
        %v962 = vcvt.s32.f32 %v898
        %v963 = vcvt.s32.f32 %v899
        %v964 = vcvt.s32.f32 %v900
        %v965 = vcvt.s32.f32 %v901
        %v966 = vcvt.s32.f32 %v902
        %v967 = vcvt.s32.f32 %v903
        %v968 = vcvt.s32.f32 %v904
        %v969 = vcvt.s32.f32 %v905
        %v970 = vcvt.s32.f32 %v906
        %v971 = vcvt.s32.f32 %v907
        %v972 = vld [vmem:[%s1] sm:$0xff]
        %v973 = vld [vmem:[%s1 + $0x8] sm:$0xff]
        %v974 = vld [vmem:[%s1 + $0x10] sm:$0xff]
        %v975 = vld [vmem:[%s1 + $0x18] sm:$0xff]
        %v976 = vld [vmem:[%s1 + $0x20] sm:$0x1]
        %977 = vmatprep.subr.mxu0 %v909
        %978 = vmatpush1.msra.mxu0 %v908
        %979 = vmatprep.subr.mxu0 %v913
        %980 = vmatpush1.msra.mxu0 %v912
        %981 = vmatprep.subr.mxu0 %v917
        %982 = vmatpush1.msra.mxu0 %v916
        %983 = vmatprep.subr.mxu0 %v921
        %984 = vmatpush1.msra.mxu0 %v920
        %985 = vmatprep.subr.mxu0 %v925
        %986 = vmatpush1.msra.mxu0 %v924
        %987 = vmatprep.subr.mxu0 %v929
        %988 = vmatpush1.msra.mxu0 %v928
        %989 = vmatprep.subr.mxu0 %v933
        %990 = vmatpush1.msra.mxu0 %v932
        %991 = vmatprep.subr.mxu0 %v937
        %992 = vmatpush1.msra.mxu0 %v936
        %993 = vmatprep.subr.mxu0 %v941
        %994 = vmatpush1.msra.mxu0 %v940
        %995 = vmatprep.subr.mxu0 %v945
        %996 = vmatpush1.msra.mxu0 %v944
        %997 = vmatprep.subr.mxu0 %v949
        %998 = vmatpush1.msra.mxu0 %v948
        %999 = vmatprep.subr.mxu0 %v953
        %1000 = vmatpush1.msra.mxu0 %v952
        %1001 = vmatprep.subr.mxu0 %v957
        %1002 = vmatpush1.msra.mxu0 %v956
        %1003 = vmatprep.subr.mxu0 %v961
        %1004 = vmatpush1.msra.mxu0 %v960
        %1005 = vmatprep.subr.mxu0 %v965
        %1006 = vmatpush1.msra.mxu0 %v964
        %1007 = vmatprep.subr.mxu0 %v969
        %1008 = vmatpush1.msra.mxu0 %v968
        %1009 = vmatprep.subr.mxu0 0.0
        %1010 = vmatpush1.msra.mxu0 0.0
        %1011 = vmatprep.subr.mxu0 0.0
        %1012 = vmatpush1.msra.mxu0 0.0
        %1013 = vmatprep.subr.mxu0 0.0
        %1014 = vmatpush1.msra.mxu0 0.0
        %1015 = vmatprep.subr.mxu0 0.0
        %1016 = vmatpush1.msra.mxu0 0.0
        %1017 = vmatprep.subr.mxu0 0.0
        %1018 = vmatpush1.msra.mxu0 0.0
        %1019 = vmatprep.subr.mxu0 0.0
        %1020 = vmatpush1.msra.mxu0 0.0
        %1021 = vmatprep.subr.mxu0 0.0
        %1022 = vmatpush1.msra.mxu0 0.0
        %1023 = vmatprep.subr.mxu0 0.0
        %1024 = vmatpush1.msra.mxu0 0.0
        %1025 = vmatprep.subr.mxu0 0.0
        %1026 = vmatpush1.msra.mxu0 0.0
        %1027 = vmatprep.subr.mxu0 0.0
        %1028 = vmatpush1.msra.mxu0 0.0
        %1029 = vmatprep.subr.mxu0 0.0
        %1030 = vmatpush1.msra.mxu0 0.0
        %1031 = vmatprep.subr.mxu0 0.0
        %1032 = vmatpush1.msra.mxu0 0.0
        %1033 = vmatprep.subr.mxu0 0.0
        %1034 = vmatpush1.msra.mxu0 0.0
        %1035 = vmatprep.subr.mxu0 0.0
        %1036 = vmatpush1.msra.mxu0 0.0
        %1037 = vmatprep.subr.mxu0 0.0
        %1038 = vmatpush1.msra.mxu0 0.0
        %1039 = vmatprep.subr.mxu0 0.0
        %1040 = vmatpush1.msra.mxu0 0.0
        %1041 = vmatprep.mubr.f32.mxu0 0.0
        %1042 = vmatmul.mubr.f32.gmra.mrb[0].mxu0 %v972
        %v1043 = vpop.f32.mrb[0].mxu0
        %v1044 = vadd.f32 0.0, %v1043
        %v1045 = vpop.f32.mrb[0].mxu0
        %v1046 = vadd.f32 0.0, %v1045
        %1047 = vmatprep.mubr.f32.mxu0 0.0
        %1048 = vmatmul.mubr.f32.gmra.mrb[0].mxu0 %v973
        %v1049 = vpop.f32.mrb[0].mxu0
        %v1050 = vadd.f32 0.0, %v1049
        %v1051 = vpop.f32.mrb[0].mxu0
        %v1052 = vadd.f32 0.0, %v1051
        %1053 = vmatprep.mubr.f32.mxu0 0.0
        %1054 = vmatmul.mubr.f32.gmra.mrb[0].mxu0 %v974
        %v1055 = vpop.f32.mrb[0].mxu0
        %v1056 = vadd.f32 0.0, %v1055
        %v1057 = vpop.f32.mrb[0].mxu0
        %v1058 = vadd.f32 0.0, %v1057
        %1059 = vmatprep.mubr.f32.mxu0 0.0
        %1060 = vmatmul.mubr.f32.gmra.mrb[0].mxu0 %v975
        %v1061 = vpop.f32.mrb[0].mxu0
        %v1062 = vadd.f32 0.0, %v1061
        %v1063 = vpop.f32.mrb[0].mxu0
        %v1064 = vadd.f32 0.0, %v1063
        %1065 = vmatprep.mubr.f32.mxu0 0.0
        %1066 = vmatmul.mubr.f32.gmra.mrb[0].mxu0 %v976
        %v1067 = vpop.f32.mrb[0].mxu0
        %v1068 = vadd.f32 0.0, %v1067
        %v1069 = vpop.f32.mrb[0].mxu0
        %v1070 = vadd.f32 0.0, %v1069
        %1071 = vdwg.mxu0
        %1072 = vmatprep.subr.mxu0 %v911
        %1073 = vmatpush1.msra.mxu0 %v910
        %1074 = vmatprep.subr.mxu0 %v915
        %1075 = vmatpush1.msra.mxu0 %v914
        %1076 = vmatprep.subr.mxu0 %v919
        %1077 = vmatpush1.msra.mxu0 %v918
        %1078 = vmatprep.subr.mxu0 %v923
        %1079 = vmatpush1.msra.mxu0 %v922
        %1080 = vmatprep.subr.mxu0 %v927
        %1081 = vmatpush1.msra.mxu0 %v926
        %1082 = vmatprep.subr.mxu0 %v931
        %1083 = vmatpush1.msra.mxu0 %v930
        %1084 = vmatprep.subr.mxu0 %v935
        %1085 = vmatpush1.msra.mxu0 %v934
        %1086 = vmatprep.subr.mxu0 %v939
        %1087 = vmatpush1.msra.mxu0 %v938
        %1088 = vmatprep.subr.mxu0 %v943
        %1089 = vmatpush1.msra.mxu0 %v942
        %1090 = vmatprep.subr.mxu0 %v947
        %1091 = vmatpush1.msra.mxu0 %v946
        %1092 = vmatprep.subr.mxu0 %v951
        %1093 = vmatpush1.msra.mxu0 %v950
        %1094 = vmatprep.subr.mxu0 %v955
        %1095 = vmatpush1.msra.mxu0 %v954
        %1096 = vmatprep.subr.mxu0 %v959
        %1097 = vmatpush1.msra.mxu0 %v958
        %1098 = vmatprep.subr.mxu0 %v963
        %1099 = vmatpush1.msra.mxu0 %v962
        %1100 = vmatprep.subr.mxu0 %v967
        %1101 = vmatpush1.msra.mxu0 %v966
        %1102 = vmatprep.subr.mxu0 %v971
        %1103 = vmatpush1.msra.mxu0 %v970
        %1104 = vmatprep.subr.mxu0 0.0
        %1105 = vmatpush1.msra.mxu0 0.0
        %1106 = vmatprep.subr.mxu0 0.0
        %1107 = vmatpush1.msra.mxu0 0.0
        %1108 = vmatprep.subr.mxu0 0.0
        %1109 = vmatpush1.msra.mxu0 0.0
        %1110 = vmatprep.subr.mxu0 0.0
        %1111 = vmatpush1.msra.mxu0 0.0
        %1112 = vmatprep.subr.mxu0 0.0
        %1113 = vmatpush1.msra.mxu0 0.0
        %1114 = vmatprep.subr.mxu0 0.0
        %1115 = vmatpush1.msra.mxu0 0.0
        %1116 = vmatprep.subr.mxu0 0.0
        %1117 = vmatpush1.msra.mxu0 0.0
        %1118 = vmatprep.subr.mxu0 0.0
        %1119 = vmatpush1.msra.mxu0 0.0
        %1120 = vmatprep.subr.mxu0 0.0
        %1121 = vmatpush1.msra.mxu0 0.0
        %1122 = vmatprep.subr.mxu0 0.0
        %1123 = vmatpush1.msra.mxu0 0.0
        %1124 = vmatprep.subr.mxu0 0.0
        %1125 = vmatpush1.msra.mxu0 0.0
        %1126 = vmatprep.subr.mxu0 0.0
        %1127 = vmatpush1.msra.mxu0 0.0
        %1128 = vmatprep.subr.mxu0 0.0
        %1129 = vmatpush1.msra.mxu0 0.0
        %1130 = vmatprep.subr.mxu0 0.0
        %1131 = vmatpush1.msra.mxu0 0.0
        %1132 = vmatprep.subr.mxu0 0.0
        %1133 = vmatpush1.msra.mxu0 0.0
        %1134 = vmatprep.subr.mxu0 0.0
        %1135 = vmatpush1.msra.mxu0 0.0
        %1136 = vmatprep.mubr.f32.mxu0 0.0
        %1137 = vmatmul.mubr.f32.gmra.mrb[0].mxu0 %v972
        %v1138 = vpop.f32.mrb[0].mxu0
        %v1139 = vadd.f32 0.0, %v1138
        %v1140 = vpop.f32.mrb[0].mxu0
        %v1141 = vadd.f32 0.0, %v1140
        %1142 = vmatprep.mubr.f32.mxu0 0.0
        %1143 = vmatmul.mubr.f32.gmra.mrb[0].mxu0 %v973
        %v1144 = vpop.f32.mrb[0].mxu0
        %v1145 = vadd.f32 0.0, %v1144
        %v1146 = vpop.f32.mrb[0].mxu0
        %v1147 = vadd.f32 0.0, %v1146
        %1148 = vmatprep.mubr.f32.mxu0 0.0
        %1149 = vmatmul.mubr.f32.gmra.mrb[0].mxu0 %v974
        %v1150 = vpop.f32.mrb[0].mxu0
        %v1151 = vadd.f32 0.0, %v1150
        %v1152 = vpop.f32.mrb[0].mxu0
        %v1153 = vadd.f32 0.0, %v1152
        %1154 = vmatprep.mubr.f32.mxu0 0.0
        %1155 = vmatmul.mubr.f32.gmra.mrb[0].mxu0 %v975
        %v1156 = vpop.f32.mrb[0].mxu0
        %v1157 = vadd.f32 0.0, %v1156
        %v1158 = vpop.f32.mrb[0].mxu0
        %v1159 = vadd.f32 0.0, %v1158
        %1160 = vmatprep.mubr.f32.mxu0 0.0
        %1161 = vmatmul.mubr.f32.gmra.mrb[0].mxu0 %v976
        %v1162 = vpop.f32.mrb[0].mxu0
        %v1163 = vadd.f32 0.0, %v1162
        %v1164 = vpop.f32.mrb[0].mxu0
        %v1165 = vadd.f32 0.0, %v1164
        %1166 = vdwg.mxu0
        %v1167 = vmul.f32 %v1044, %v1044
        %v1168 = vmul.f32 %v1046, %v1046
        %v1169 = vmul.f32 %v1139, %v1139
        %v1170 = vmul.f32 %v1141, %v1141
        %v1171 = vmul.f32 %v1050, %v1050
        %v1172 = vmul.f32 %v1052, %v1052
        %v1173 = vmul.f32 %v1145, %v1145
        %v1174 = vmul.f32 %v1147, %v1147
        %v1175 = vsub.f32 %v1167, %v1056
        %v1176 = vsub.f32 %v1168, %v1058
        %v1177 = vsub.f32 %v1169, %v1151
        %v1178 = vsub.f32 %v1170, %v1153
        %v1179 = vsub.f32 %v1171, %v1062
        %v1180 = vsub.f32 %v1172, %v1064
        %v1181 = vsub.f32 %v1173, %v1157
        %v1182 = vsub.f32 %v1174, %v1159
        %v1183 = vmul.f32 %v1175, 0.5
        %v1184 = vmul.f32 %v1176, 0.5
        %v1185 = vmul.f32 %v1177, 0.5
        %v1186 = vmul.f32 %v1178, 0.5
        %v1187 = vmul.f32 %v1179, 0.5
        %v1188 = vmul.f32 %v1180, 0.5
        %v1189 = vmul.f32 %v1181, 0.5
        %v1190 = vmul.f32 %v1182, 0.5
        %v1191 = vld [vmem:[%s2] sm:$0xff]
        %v1192 = vld [vmem:[%s2 + $0x8] sm:$0xff]
        %v1193 = vld [vmem:[%s2 + $0x10] sm:$0xff]
        %v1194 = vld [vmem:[%s2 + $0x18] sm:$0xff]
        %v1195 = vld [vmem:[%s3] sm:$0xff]
        %v1196 = vld [vmem:[%s3 + $0x8] sm:$0xff]
        %v1197 = vld [vmem:[%s3 + $0x10] sm:$0xff]
        %v1198 = vld [vmem:[%s3 + $0x18] sm:$0xff]
        %1200 = vset.pattern.permute.xlu0 0
        %1201 = vperm.xlu0 %1200, %v1195
        %v1202 = vpop.permute.xlu0 %1201
        %1205 = vset.pattern.permute.xlu0 0
        %1206 = vperm.xlu0 %1205, %v1196
        %v1207 = vpop.permute.xlu0 %1206
        %1210 = vset.pattern.permute.xlu0 0
        %1211 = vperm.xlu0 %1210, %v1197
        %v1212 = vpop.permute.xlu0 %1211
        %1215 = vset.pattern.permute.xlu0 0
        %1216 = vperm.xlu0 %1215, %v1198
        %v1217 = vpop.permute.xlu0 %1216
        %vm1219 = vcmask 130048
        %v1221 = vsel %vm1219, %v1191, 0
        %v1224 = vsel %vm1219, %v1192, 0
        %v1227 = vsel %vm1219, %v1193, 0
        %v1230 = vsel %vm1219, %v1194, 0
        %1232 = vmatprep.subr.mxu0 %v1184
        %1233 = vmatpush1.msra.mxu0 %v1183
        %1234 = vmatprep.subr.mxu0 %v1188
        %1235 = vmatpush1.msra.mxu0 %v1187
        %1236 = vmatprep.subr.mxu0 0.0
        %1237 = vmatpush1.msra.mxu0 0.0
        %1238 = vmatprep.subr.mxu0 0.0
        %1239 = vmatpush1.msra.mxu0 0.0
        %1240 = vmatprep.subr.mxu0 0.0
        %1241 = vmatpush1.msra.mxu0 0.0
        %1242 = vmatprep.subr.mxu0 0.0
        %1243 = vmatpush1.msra.mxu0 0.0
        %1244 = vmatprep.subr.mxu0 0.0
        %1245 = vmatpush1.msra.mxu0 0.0
        %1246 = vmatprep.subr.mxu0 0.0
        %1247 = vmatpush1.msra.mxu0 0.0
        %1248 = vmatprep.subr.mxu0 0.0
        %1249 = vmatpush1.msra.mxu0 0.0
        %1250 = vmatprep.subr.mxu0 0.0
        %1251 = vmatpush1.msra.mxu0 0.0
        %1252 = vmatprep.subr.mxu0 0.0
        %1253 = vmatpush1.msra.mxu0 0.0
        %1254 = vmatprep.subr.mxu0 0.0
        %1255 = vmatpush1.msra.mxu0 0.0
        %1256 = vmatprep.subr.mxu0 0.0
        %1257 = vmatpush1.msra.mxu0 0.0
        %1258 = vmatprep.subr.mxu0 0.0
        %1259 = vmatpush1.msra.mxu0 0.0
        %1260 = vmatprep.subr.mxu0 0.0
        %1261 = vmatpush1.msra.mxu0 0.0
        %1262 = vmatprep.subr.mxu0 0.0
        %1263 = vmatpush1.msra.mxu0 0.0
        %1264 = vmatprep.subr.mxu0 0.0
        %1265 = vmatpush1.msra.mxu0 0.0
        %1266 = vmatprep.subr.mxu0 0.0
        %1267 = vmatpush1.msra.mxu0 0.0
        %1268 = vmatprep.subr.mxu0 0.0
        %1269 = vmatpush1.msra.mxu0 0.0
        %1270 = vmatprep.subr.mxu0 0.0
        %1271 = vmatpush1.msra.mxu0 0.0
        %1272 = vmatprep.subr.mxu0 0.0
        %1273 = vmatpush1.msra.mxu0 0.0
        %1274 = vmatprep.subr.mxu0 0.0
        %1275 = vmatpush1.msra.mxu0 0.0
        %1276 = vmatprep.subr.mxu0 0.0
        %1277 = vmatpush1.msra.mxu0 0.0
        %1278 = vmatprep.subr.mxu0 0.0
        %1279 = vmatpush1.msra.mxu0 0.0
        %1280 = vmatprep.subr.mxu0 0.0
        %1281 = vmatpush1.msra.mxu0 0.0
        %1282 = vmatprep.subr.mxu0 0.0
        %1283 = vmatpush1.msra.mxu0 0.0
        %1284 = vmatprep.subr.mxu0 0.0
        %1285 = vmatpush1.msra.mxu0 0.0
        %1286 = vmatprep.subr.mxu0 0.0
        %1287 = vmatpush1.msra.mxu0 0.0
        %1288 = vmatprep.subr.mxu0 0.0
        %1289 = vmatpush1.msra.mxu0 0.0
        %1290 = vmatprep.subr.mxu0 0.0
        %1291 = vmatpush1.msra.mxu0 0.0
        %1292 = vmatprep.subr.mxu0 0.0
        %1293 = vmatpush1.msra.mxu0 0.0
        %1294 = vmatprep.subr.mxu0 0.0
        %1295 = vmatpush1.msra.mxu0 0.0
        %1296 = vmatprep.mubr.f32.mxu0 0.0
        %1297 = vmatmul.mubr.f32.gmra.mrb[0].mxu0 %v1221
        %v1298 = vpop.f32.mrb[0].mxu0
        %v1299 = vadd.f32 %v1202, %v1298
        %v1300 = vpop.f32.mrb[0].mxu0
        %v1301 = vadd.f32 %v1202, %v1300
        %1302 = vmatprep.mubr.f32.mxu0 0.0
        %1303 = vmatmul.mubr.f32.gmra.mrb[0].mxu0 %v1224
        %v1304 = vpop.f32.mrb[0].mxu0
        %v1305 = vadd.f32 %v1207, %v1304
        %v1306 = vpop.f32.mrb[0].mxu0
        %v1307 = vadd.f32 %v1207, %v1306
        %1308 = vmatprep.mubr.f32.mxu0 0.0
        %1309 = vmatmul.mubr.f32.gmra.mrb[0].mxu0 %v1227
        %v1310 = vpop.f32.mrb[0].mxu0
        %v1311 = vadd.f32 %v1212, %v1310
        %v1312 = vpop.f32.mrb[0].mxu0
        %v1313 = vadd.f32 %v1212, %v1312
        %1314 = vmatprep.mubr.f32.mxu0 0.0
        %1315 = vmatmul.mubr.f32.gmra.mrb[0].mxu0 %v1230
        %v1316 = vpop.f32.mrb[0].mxu0
        %v1317 = vadd.f32 %v1217, %v1316
        %v1318 = vpop.f32.mrb[0].mxu0
        %v1319 = vadd.f32 %v1217, %v1318
        %1320 = vdwg.mxu0
        %1321 = vmatprep.subr.mxu0 %v1186
        %1322 = vmatpush1.msra.mxu0 %v1185
        %1323 = vmatprep.subr.mxu0 %v1190
        %1324 = vmatpush1.msra.mxu0 %v1189
        %1325 = vmatprep.subr.mxu0 0.0
        %1326 = vmatpush1.msra.mxu0 0.0
        %1327 = vmatprep.subr.mxu0 0.0
        %1328 = vmatpush1.msra.mxu0 0.0
        %1329 = vmatprep.subr.mxu0 0.0
        %1330 = vmatpush1.msra.mxu0 0.0
        %1331 = vmatprep.subr.mxu0 0.0
        %1332 = vmatpush1.msra.mxu0 0.0
        %1333 = vmatprep.subr.mxu0 0.0
        %1334 = vmatpush1.msra.mxu0 0.0
        %1335 = vmatprep.subr.mxu0 0.0
        %1336 = vmatpush1.msra.mxu0 0.0
        %1337 = vmatprep.subr.mxu0 0.0
        %1338 = vmatpush1.msra.mxu0 0.0
        %1339 = vmatprep.subr.mxu0 0.0
        %1340 = vmatpush1.msra.mxu0 0.0
        %1341 = vmatprep.subr.mxu0 0.0
        %1342 = vmatpush1.msra.mxu0 0.0
        %1343 = vmatprep.subr.mxu0 0.0
        %1344 = vmatpush1.msra.mxu0 0.0
        %1345 = vmatprep.subr.mxu0 0.0
        %1346 = vmatpush1.msra.mxu0 0.0
        %1347 = vmatprep.subr.mxu0 0.0
        %1348 = vmatpush1.msra.mxu0 0.0
        %1349 = vmatprep.subr.mxu0 0.0
        %1350 = vmatpush1.msra.mxu0 0.0
        %1351 = vmatprep.subr.mxu0 0.0
        %1352 = vmatpush1.msra.mxu0 0.0
        %1353 = vmatprep.subr.mxu0 0.0
        %1354 = vmatpush1.msra.mxu0 0.0
        %1355 = vmatprep.subr.mxu0 0.0
        %1356 = vmatpush1.msra.mxu0 0.0
        %1357 = vmatprep.subr.mxu0 0.0
        %1358 = vmatpush1.msra.mxu0 0.0
        %1359 = vmatprep.subr.mxu0 0.0
        %1360 = vmatpush1.msra.mxu0 0.0
        %1361 = vmatprep.subr.mxu0 0.0
        %1362 = vmatpush1.msra.mxu0 0.0
        %1363 = vmatprep.subr.mxu0 0.0
        %1364 = vmatpush1.msra.mxu0 0.0
        %1365 = vmatprep.subr.mxu0 0.0
        %1366 = vmatpush1.msra.mxu0 0.0
        %1367 = vmatprep.subr.mxu0 0.0
        %1368 = vmatpush1.msra.mxu0 0.0
        %1369 = vmatprep.subr.mxu0 0.0
        %1370 = vmatpush1.msra.mxu0 0.0
        %1371 = vmatprep.subr.mxu0 0.0
        %1372 = vmatpush1.msra.mxu0 0.0
        %1373 = vmatprep.subr.mxu0 0.0
        %1374 = vmatpush1.msra.mxu0 0.0
        %1375 = vmatprep.subr.mxu0 0.0
        %1376 = vmatpush1.msra.mxu0 0.0
        %1377 = vmatprep.subr.mxu0 0.0
        %1378 = vmatpush1.msra.mxu0 0.0
        %1379 = vmatprep.subr.mxu0 0.0
        %1380 = vmatpush1.msra.mxu0 0.0
        %1381 = vmatprep.subr.mxu0 0.0
        %1382 = vmatpush1.msra.mxu0 0.0
        %1383 = vmatprep.subr.mxu0 0.0
        %1384 = vmatpush1.msra.mxu0 0.0
        %1385 = vmatprep.mubr.f32.mxu0 0.0
        %1386 = vmatmul.mubr.f32.gmra.mrb[0].mxu0 %v1221
        %v1387 = vpop.f32.mrb[0].mxu0
        %v1388 = vadd.f32 %v1202, %v1387
        %v1389 = vpop.f32.mrb[0].mxu0
        %v1390 = vadd.f32 %v1202, %v1389
        %1391 = vmatprep.mubr.f32.mxu0 0.0
        %1392 = vmatmul.mubr.f32.gmra.mrb[0].mxu0 %v1224
        %v1393 = vpop.f32.mrb[0].mxu0
        %v1394 = vadd.f32 %v1207, %v1393
        %v1395 = vpop.f32.mrb[0].mxu0
        %v1396 = vadd.f32 %v1207, %v1395
        %1397 = vmatprep.mubr.f32.mxu0 0.0
        %1398 = vmatmul.mubr.f32.gmra.mrb[0].mxu0 %v1227
        %v1399 = vpop.f32.mrb[0].mxu0
        %v1400 = vadd.f32 %v1212, %v1399
        %v1401 = vpop.f32.mrb[0].mxu0
        %v1402 = vadd.f32 %v1212, %v1401
        %1403 = vmatprep.mubr.f32.mxu0 0.0
        %1404 = vmatmul.mubr.f32.gmra.mrb[0].mxu0 %v1230
        %v1405 = vpop.f32.mrb[0].mxu0
        %v1406 = vadd.f32 %v1217, %v1405
        %v1407 = vpop.f32.mrb[0].mxu0
        %v1408 = vadd.f32 %v1217, %v1407
        %1409 = vdwg.mxu0
        %v1410 = vmax.f32 %v1299, 0.0
        %v1411 = vmax.f32 %v1301, 0.0
        %v1412 = vmax.f32 %v1388, 0.0
        %v1413 = vmax.f32 %v1390, 0.0
        %v1414 = vmax.f32 %v1305, 0.0
        %v1415 = vmax.f32 %v1307, 0.0
        %v1416 = vmax.f32 %v1394, 0.0
        %v1417 = vmax.f32 %v1396, 0.0
        %v1418 = vmax.f32 %v1311, 0.0
        %v1419 = vmax.f32 %v1313, 0.0
        %v1420 = vmax.f32 %v1400, 0.0
        %v1421 = vmax.f32 %v1402, 0.0
        %v1422 = vmax.f32 %v1317, 0.0
        %v1423 = vmax.f32 %v1319, 0.0
        %v1424 = vmax.f32 %v1406, 0.0
        %v1425 = vmax.f32 %v1408, 0.0
        %v1426 = vld [vmem:[%s4] sm:$0xff]
        %v1427 = vld [vmem:[%s4 + $0x8] sm:$0xff]
        %v1428 = vld [vmem:[%s5] sm:$0xff]
        %v1429 = vld [vmem:[%s5 + $0x8] sm:$0xff]
        %1431 = vset.pattern.permute.xlu0 0
        %1432 = vperm.xlu0 %1431, %v1428
        %v1433 = vpop.permute.xlu0 %1432
        %1436 = vset.pattern.permute.xlu0 0
        %1437 = vperm.xlu0 %1436, %v1429
        %v1438 = vpop.permute.xlu0 %1437
        %vm1440 = vcmask 261120
        %v1442 = vsel %vm1440, %v1426, 0
        %v1445 = vsel %vm1440, %v1427, 0
        %1447 = vmatprep.subr.mxu0 %v1411
        %1448 = vmatpush1.msra.mxu0 %v1410
        %1449 = vmatprep.subr.mxu0 %v1415
        %1450 = vmatpush1.msra.mxu0 %v1414
        %1451 = vmatprep.subr.mxu0 %v1419
        %1452 = vmatpush1.msra.mxu0 %v1418
        %1453 = vmatprep.subr.mxu0 %v1423
        %1454 = vmatpush1.msra.mxu0 %v1422
        %1455 = vmatprep.subr.mxu0 0.0
        %1456 = vmatpush1.msra.mxu0 0.0
        %1457 = vmatprep.subr.mxu0 0.0
        %1458 = vmatpush1.msra.mxu0 0.0
        %1459 = vmatprep.subr.mxu0 0.0
        %1460 = vmatpush1.msra.mxu0 0.0
        %1461 = vmatprep.subr.mxu0 0.0
        %1462 = vmatpush1.msra.mxu0 0.0
        %1463 = vmatprep.subr.mxu0 0.0
        %1464 = vmatpush1.msra.mxu0 0.0
        %1465 = vmatprep.subr.mxu0 0.0
        %1466 = vmatpush1.msra.mxu0 0.0
        %1467 = vmatprep.subr.mxu0 0.0
        %1468 = vmatpush1.msra.mxu0 0.0
        %1469 = vmatprep.subr.mxu0 0.0
        %1470 = vmatpush1.msra.mxu0 0.0
        %1471 = vmatprep.subr.mxu0 0.0
        %1472 = vmatpush1.msra.mxu0 0.0
        %1473 = vmatprep.subr.mxu0 0.0
        %1474 = vmatpush1.msra.mxu0 0.0
        %1475 = vmatprep.subr.mxu0 0.0
        %1476 = vmatpush1.msra.mxu0 0.0
        %1477 = vmatprep.subr.mxu0 0.0
        %1478 = vmatpush1.msra.mxu0 0.0
        %1479 = vmatprep.subr.mxu0 0.0
        %1480 = vmatpush1.msra.mxu0 0.0
        %1481 = vmatprep.subr.mxu0 0.0
        %1482 = vmatpush1.msra.mxu0 0.0
        %1483 = vmatprep.subr.mxu0 0.0
        %1484 = vmatpush1.msra.mxu0 0.0
        %1485 = vmatprep.subr.mxu0 0.0
        %1486 = vmatpush1.msra.mxu0 0.0
        %1487 = vmatprep.subr.mxu0 0.0
        %1488 = vmatpush1.msra.mxu0 0.0
        %1489 = vmatprep.subr.mxu0 0.0
        %1490 = vmatpush1.msra.mxu0 0.0
        %1491 = vmatprep.subr.mxu0 0.0
        %1492 = vmatpush1.msra.mxu0 0.0
        %1493 = vmatprep.subr.mxu0 0.0
        %1494 = vmatpush1.msra.mxu0 0.0
        %1495 = vmatprep.subr.mxu0 0.0
        %1496 = vmatpush1.msra.mxu0 0.0
        %1497 = vmatprep.subr.mxu0 0.0
        %1498 = vmatpush1.msra.mxu0 0.0
        %1499 = vmatprep.subr.mxu0 0.0
        %1500 = vmatpush1.msra.mxu0 0.0
        %1501 = vmatprep.subr.mxu0 0.0
        %1502 = vmatpush1.msra.mxu0 0.0
        %1503 = vmatprep.subr.mxu0 0.0
        %1504 = vmatpush1.msra.mxu0 0.0
        %1505 = vmatprep.subr.mxu0 0.0
        %1506 = vmatpush1.msra.mxu0 0.0
        %1507 = vmatprep.subr.mxu0 0.0
        %1508 = vmatpush1.msra.mxu0 0.0
        %1509 = vmatprep.subr.mxu0 0.0
        %1510 = vmatpush1.msra.mxu0 0.0
        %1511 = vmatprep.mubr.f32.mxu0 0.0
        %1512 = vmatmul.mubr.f32.gmra.mrb[0].mxu0 %v1442
        %v1513 = vpop.f32.mrb[0].mxu0
        %v1514 = vadd.f32 %v1433, %v1513
        %v1515 = vpop.f32.mrb[0].mxu0
        %v1516 = vadd.f32 %v1433, %v1515
        %1517 = vmatprep.mubr.f32.mxu0 0.0
        %1518 = vmatmul.mubr.f32.gmra.mrb[0].mxu0 %v1445
        %v1519 = vpop.f32.mrb[0].mxu0
        %v1520 = vadd.f32 %v1438, %v1519
        %v1521 = vpop.f32.mrb[0].mxu0
        %v1522 = vadd.f32 %v1438, %v1521
        %1523 = vdwg.mxu0
        %1524 = vmatprep.subr.mxu0 %v1413
        %1525 = vmatpush1.msra.mxu0 %v1412
        %1526 = vmatprep.subr.mxu0 %v1417
        %1527 = vmatpush1.msra.mxu0 %v1416
        %1528 = vmatprep.subr.mxu0 %v1421
        %1529 = vmatpush1.msra.mxu0 %v1420
        %1530 = vmatprep.subr.mxu0 %v1425
        %1531 = vmatpush1.msra.mxu0 %v1424
        %1532 = vmatprep.subr.mxu0 0.0
        %1533 = vmatpush1.msra.mxu0 0.0
        %1534 = vmatprep.subr.mxu0 0.0
        %1535 = vmatpush1.msra.mxu0 0.0
        %1536 = vmatprep.subr.mxu0 0.0
        %1537 = vmatpush1.msra.mxu0 0.0
        %1538 = vmatprep.subr.mxu0 0.0
        %1539 = vmatpush1.msra.mxu0 0.0
        %1540 = vmatprep.subr.mxu0 0.0
        %1541 = vmatpush1.msra.mxu0 0.0
        %1542 = vmatprep.subr.mxu0 0.0
        %1543 = vmatpush1.msra.mxu0 0.0
        %1544 = vmatprep.subr.mxu0 0.0
        %1545 = vmatpush1.msra.mxu0 0.0
        %1546 = vmatprep.subr.mxu0 0.0
        %1547 = vmatpush1.msra.mxu0 0.0
        %1548 = vmatprep.subr.mxu0 0.0
        %1549 = vmatpush1.msra.mxu0 0.0
        %1550 = vmatprep.subr.mxu0 0.0
        %1551 = vmatpush1.msra.mxu0 0.0
        %1552 = vmatprep.subr.mxu0 0.0
        %1553 = vmatpush1.msra.mxu0 0.0
        %1554 = vmatprep.subr.mxu0 0.0
        %1555 = vmatpush1.msra.mxu0 0.0
        %1556 = vmatprep.subr.mxu0 0.0
        %1557 = vmatpush1.msra.mxu0 0.0
        %1558 = vmatprep.subr.mxu0 0.0
        %1559 = vmatpush1.msra.mxu0 0.0
        %1560 = vmatprep.subr.mxu0 0.0
        %1561 = vmatpush1.msra.mxu0 0.0
        %1562 = vmatprep.subr.mxu0 0.0
        %1563 = vmatpush1.msra.mxu0 0.0
        %1564 = vmatprep.subr.mxu0 0.0
        %1565 = vmatpush1.msra.mxu0 0.0
        %1566 = vmatprep.subr.mxu0 0.0
        %1567 = vmatpush1.msra.mxu0 0.0
        %1568 = vmatprep.subr.mxu0 0.0
        %1569 = vmatpush1.msra.mxu0 0.0
        %1570 = vmatprep.subr.mxu0 0.0
        %1571 = vmatpush1.msra.mxu0 0.0
        %1572 = vmatprep.subr.mxu0 0.0
        %1573 = vmatpush1.msra.mxu0 0.0
        %1574 = vmatprep.subr.mxu0 0.0
        %1575 = vmatpush1.msra.mxu0 0.0
        %1576 = vmatprep.subr.mxu0 0.0
        %1577 = vmatpush1.msra.mxu0 0.0
        %1578 = vmatprep.subr.mxu0 0.0
        %1579 = vmatpush1.msra.mxu0 0.0
        %1580 = vmatprep.subr.mxu0 0.0
        %1581 = vmatpush1.msra.mxu0 0.0
        %1582 = vmatprep.subr.mxu0 0.0
        %1583 = vmatpush1.msra.mxu0 0.0
        %1584 = vmatprep.subr.mxu0 0.0
        %1585 = vmatpush1.msra.mxu0 0.0
        %1586 = vmatprep.subr.mxu0 0.0
        %1587 = vmatpush1.msra.mxu0 0.0
        %1588 = vmatprep.mubr.f32.mxu0 0.0
        %1589 = vmatmul.mubr.f32.gmra.mrb[0].mxu0 %v1442
        %v1590 = vpop.f32.mrb[0].mxu0
        %v1591 = vadd.f32 %v1433, %v1590
        %v1592 = vpop.f32.mrb[0].mxu0
        %v1593 = vadd.f32 %v1433, %v1592
        %1594 = vmatprep.mubr.f32.mxu0 0.0
        %1595 = vmatmul.mubr.f32.gmra.mrb[0].mxu0 %v1445
        %v1596 = vpop.f32.mrb[0].mxu0
        %v1597 = vadd.f32 %v1438, %v1596
        %v1598 = vpop.f32.mrb[0].mxu0
        %v1599 = vadd.f32 %v1438, %v1598
        %1600 = vdwg.mxu0
        %v1601 = vmax.f32 %v1514, 0.0
        %v1602 = vmax.f32 %v1516, 0.0
        %v1603 = vmax.f32 %v1591, 0.0
        %v1604 = vmax.f32 %v1593, 0.0
        %v1605 = vmax.f32 %v1520, 0.0
        %v1606 = vmax.f32 %v1522, 0.0
        %v1607 = vmax.f32 %v1597, 0.0
        %v1608 = vmax.f32 %v1599, 0.0
        %v1609 = vld [vmem:[%s6] sm:$0x1]
        %v1611 = vsel %vm1219, %v1609, 0
        %1613 = vmatprep.subr.mxu0 %v1602
        %1614 = vmatpush1.msra.mxu0 %v1601
        %1615 = vmatprep.subr.mxu0 %v1606
        %1616 = vmatpush1.msra.mxu0 %v1605
        %1617 = vmatprep.subr.mxu0 0.0
        %1618 = vmatpush1.msra.mxu0 0.0
        %1619 = vmatprep.subr.mxu0 0.0
        %1620 = vmatpush1.msra.mxu0 0.0
        %1621 = vmatprep.subr.mxu0 0.0
        %1622 = vmatpush1.msra.mxu0 0.0
        %1623 = vmatprep.subr.mxu0 0.0
        %1624 = vmatpush1.msra.mxu0 0.0
        %1625 = vmatprep.subr.mxu0 0.0
        %1626 = vmatpush1.msra.mxu0 0.0
        %1627 = vmatprep.subr.mxu0 0.0
        %1628 = vmatpush1.msra.mxu0 0.0
        %1629 = vmatprep.subr.mxu0 0.0
        %1630 = vmatpush1.msra.mxu0 0.0
        %1631 = vmatprep.subr.mxu0 0.0
        %1632 = vmatpush1.msra.mxu0 0.0
        %1633 = vmatprep.subr.mxu0 0.0
        %1634 = vmatpush1.msra.mxu0 0.0
        %1635 = vmatprep.subr.mxu0 0.0
        %1636 = vmatpush1.msra.mxu0 0.0
        %1637 = vmatprep.subr.mxu0 0.0
        %1638 = vmatpush1.msra.mxu0 0.0
        %1639 = vmatprep.subr.mxu0 0.0
        %1640 = vmatpush1.msra.mxu0 0.0
        %1641 = vmatprep.subr.mxu0 0.0
        %1642 = vmatpush1.msra.mxu0 0.0
        %1643 = vmatprep.subr.mxu0 0.0
        %1644 = vmatpush1.msra.mxu0 0.0
        %1645 = vmatprep.subr.mxu0 0.0
        %1646 = vmatpush1.msra.mxu0 0.0
        %1647 = vmatprep.subr.mxu0 0.0
        %1648 = vmatpush1.msra.mxu0 0.0
        %1649 = vmatprep.subr.mxu0 0.0
        %1650 = vmatpush1.msra.mxu0 0.0
        %1651 = vmatprep.subr.mxu0 0.0
        %1652 = vmatpush1.msra.mxu0 0.0
        %1653 = vmatprep.subr.mxu0 0.0
        %1654 = vmatpush1.msra.mxu0 0.0
        %1655 = vmatprep.subr.mxu0 0.0
        %1656 = vmatpush1.msra.mxu0 0.0
        %1657 = vmatprep.subr.mxu0 0.0
        %1658 = vmatpush1.msra.mxu0 0.0
        %1659 = vmatprep.subr.mxu0 0.0
        %1660 = vmatpush1.msra.mxu0 0.0
        %1661 = vmatprep.subr.mxu0 0.0
        %1662 = vmatpush1.msra.mxu0 0.0
        %1663 = vmatprep.subr.mxu0 0.0
        %1664 = vmatpush1.msra.mxu0 0.0
        %1665 = vmatprep.subr.mxu0 0.0
        %1666 = vmatpush1.msra.mxu0 0.0
        %1667 = vmatprep.subr.mxu0 0.0
        %1668 = vmatpush1.msra.mxu0 0.0
        %1669 = vmatprep.subr.mxu0 0.0
        %1670 = vmatpush1.msra.mxu0 0.0
        %1671 = vmatprep.subr.mxu0 0.0
        %1672 = vmatpush1.msra.mxu0 0.0
        %1673 = vmatprep.subr.mxu0 0.0
        %1674 = vmatpush1.msra.mxu0 0.0
        %1675 = vmatprep.subr.mxu0 0.0
        %1676 = vmatpush1.msra.mxu0 0.0
        %1677 = vmatprep.mubr.f32.mxu0 0.0
        %1678 = vmatmul.mubr.f32.gmra.mrb[0].mxu0 %v1611
        %v1679 = vpop.f32.mrb[0].mxu0
        %v1680 = vadd.f32 0.0, %v1679
        %v1681 = vpop.f32.mrb[0].mxu0
        %v1682 = vadd.f32 0.0, %v1681
        %1683 = vdwg.mxu0
        %1684 = vmatprep.subr.mxu0 %v1604
        %1685 = vmatpush1.msra.mxu0 %v1603
        %1686 = vmatprep.subr.mxu0 %v1608
        %1687 = vmatpush1.msra.mxu0 %v1607
        %1688 = vmatprep.subr.mxu0 0.0
        %1689 = vmatpush1.msra.mxu0 0.0
        %1690 = vmatprep.subr.mxu0 0.0
        %1691 = vmatpush1.msra.mxu0 0.0
        %1692 = vmatprep.subr.mxu0 0.0
        %1693 = vmatpush1.msra.mxu0 0.0
        %1694 = vmatprep.subr.mxu0 0.0
        %1695 = vmatpush1.msra.mxu0 0.0
        %1696 = vmatprep.subr.mxu0 0.0
        %1697 = vmatpush1.msra.mxu0 0.0
        %1698 = vmatprep.subr.mxu0 0.0
        %1699 = vmatpush1.msra.mxu0 0.0
        %1700 = vmatprep.subr.mxu0 0.0
        %1701 = vmatpush1.msra.mxu0 0.0
        %1702 = vmatprep.subr.mxu0 0.0
        %1703 = vmatpush1.msra.mxu0 0.0
        %1704 = vmatprep.subr.mxu0 0.0
        %1705 = vmatpush1.msra.mxu0 0.0
        %1706 = vmatprep.subr.mxu0 0.0
        %1707 = vmatpush1.msra.mxu0 0.0
        %1708 = vmatprep.subr.mxu0 0.0
        %1709 = vmatpush1.msra.mxu0 0.0
        %1710 = vmatprep.subr.mxu0 0.0
        %1711 = vmatpush1.msra.mxu0 0.0
        %1712 = vmatprep.subr.mxu0 0.0
        %1713 = vmatpush1.msra.mxu0 0.0
        %1714 = vmatprep.subr.mxu0 0.0
        %1715 = vmatpush1.msra.mxu0 0.0
        %1716 = vmatprep.subr.mxu0 0.0
        %1717 = vmatpush1.msra.mxu0 0.0
        %1718 = vmatprep.subr.mxu0 0.0
        %1719 = vmatpush1.msra.mxu0 0.0
        %1720 = vmatprep.subr.mxu0 0.0
        %1721 = vmatpush1.msra.mxu0 0.0
        %1722 = vmatprep.subr.mxu0 0.0
        %1723 = vmatpush1.msra.mxu0 0.0
        %1724 = vmatprep.subr.mxu0 0.0
        %1725 = vmatpush1.msra.mxu0 0.0
        %1726 = vmatprep.subr.mxu0 0.0
        %1727 = vmatpush1.msra.mxu0 0.0
        %1728 = vmatprep.subr.mxu0 0.0
        %1729 = vmatpush1.msra.mxu0 0.0
        %1730 = vmatprep.subr.mxu0 0.0
        %1731 = vmatpush1.msra.mxu0 0.0
        %1732 = vmatprep.subr.mxu0 0.0
        %1733 = vmatpush1.msra.mxu0 0.0
        %1734 = vmatprep.subr.mxu0 0.0
        %1735 = vmatpush1.msra.mxu0 0.0
        %1736 = vmatprep.subr.mxu0 0.0
        %1737 = vmatpush1.msra.mxu0 0.0
        %1738 = vmatprep.subr.mxu0 0.0
        %1739 = vmatpush1.msra.mxu0 0.0
        %1740 = vmatprep.subr.mxu0 0.0
        %1741 = vmatpush1.msra.mxu0 0.0
        %1742 = vmatprep.subr.mxu0 0.0
        %1743 = vmatpush1.msra.mxu0 0.0
        %1744 = vmatprep.subr.mxu0 0.0
        %1745 = vmatpush1.msra.mxu0 0.0
        %1746 = vmatprep.subr.mxu0 0.0
        %1747 = vmatpush1.msra.mxu0 0.0
        %1748 = vmatprep.mubr.f32.mxu0 0.0
        %1749 = vmatmul.mubr.f32.gmra.mrb[0].mxu0 %v1611
        %v1750 = vpop.f32.mrb[0].mxu0
        %v1751 = vadd.f32 0.0, %v1750
        %v1752 = vpop.f32.mrb[0].mxu0
        %v1753 = vadd.f32 0.0, %v1752
        %1754 = vdwg.mxu0
        %v1755 = vadd.f32 %v1068, %v1680
        %v1756 = vadd.f32 %v1070, %v1682
        %v1757 = vadd.f32 %v1163, %v1751
        %v1758 = vadd.f32 %v1165, %v1753
        %s1759 = sld [smem:[#allocation2]]
        %v1760 = vstv %s1759
        %v1761 = vadd.f32 %v1755, %v1760
        %v1762 = vadd.f32 %v1756, %v1760
        %v1763 = vadd.f32 %v1757, %v1760
        %v1764 = vadd.f32 %v1758, %v1760
        %v1765 = vxor.u32 %v1761, 2147483648
        %v1766 = vxor.u32 %v1762, 2147483648
        %v1767 = vxor.u32 %v1763, 2147483648
        %v1768 = vxor.u32 %v1764, 2147483648
        %v1769 = vmul.f32 %v1765, 1.442695
        %v1770 = vpow.pop %v1769
        %v1771 = vmul.f32 %v1766, 1.442695
        %v1772 = vpow.pop %v1771
        %v1773 = vmul.f32 %v1767, 1.442695
        %v1774 = vpow.pop %v1773
        %v1775 = vmul.f32 %v1768, 1.442695
        %v1776 = vpow.pop %v1775
        %v1777 = vadd.f32 %v1770, 1.0
        %v1778 = vadd.f32 %v1772, 1.0
        %v1779 = vadd.f32 %v1774, 1.0
        %v1780 = vadd.f32 %v1776, 1.0
        %v1781 = vrcp.pop %v1777
        %v1782 = vmul.f32 1.0, %v1781
        %v1783 = vrcp.pop %v1778
        %v1784 = vmul.f32 1.0, %v1783
        %v1785 = vrcp.pop %v1779
        %v1786 = vmul.f32 1.0, %v1785
        %v1787 = vrcp.pop %v1780
        %v1788 = vmul.f32 1.0, %v1787
        %v1793 = vcombine.low %v1782, %v1784
        %v1794 = vcombine.low %v1786, %v1788
        %v1796 = vunpack.c.l.s4 1966171168
        %v1797 = vunpack.c.0.s8 %v1796
        %v1798 = vlaneseq
        %v1799 = vshrl.u32 %v1798, 7
        %v1800 = vsub.s32 %v1797, %v1799
        %v1801 = vrot.slane %v1793, %v1800
        %v1803 = vunpack.c.l.s4 1966171168
        %v1804 = vunpack.c.0.s8 %v1803
        %v1805 = vlaneseq
        %v1806 = vshrl.u32 %v1805, 7
        %v1807 = vsub.s32 %v1804, %v1806
        %v1808 = vrot.slane %v1794, %v1807
        %v1809 = vcombine.low %v1801, %v1808
        %v1811 = vunpack.c.l.s4 1966171168
        %v1812 = vunpack.c.0.s8 %v1811
        %v1813 = vlaneseq
        %v1814 = vshrl.u32 %v1813, 7
        %v1815 = vsub.s32 %v1812, %v1814
        %v1816 = vrot.slane %v1809, %v1815
        %v1818 = vlaneseq
        %vm1819 = vcmp.ge.s32.totalorder %v1818, 0
        %vm1820 = vcmp.lt.s32.totalorder %v1818, 512
        %vm1821 = vmand %vm1819, %vm1820
        %1822 = vst.msk [vmem:[%s300] sm:$0xf] %vm1821, %v1816
        %s1823 = sand.u32 %s204, 1
        %s1824 = scalar_lea.sflag [#allocation4], %s1823
        %s1825 = sand.u32 %s204, 1
        %s1826 = smul.addr %s1825, 4
        %s1827 = scalar_lea.vmem [#allocation3], %s1826
        // Predicated region
        $region53: #{tpu_custom_call.1} parent=51 // pred_check
          %p1828 = pneg %p214
        $region54: #{tpu_custom_call.1} parent=51 // pred_check_branch
          %1830 = sbr.rel (%p1828) target = $region56
        $region55: #{tpu_custom_call.1} parent=51 // pred_region
          %s1831 = smul.u32 4, %s23
          %s1833 = ssub.s32 64, 64
          %1834 = vsyncadd %s1824, %s1833
          %s1835 = smul.addr %s1831, 16
          %s1836 = scalar_lea.hbm %s8, %s1835
          %s1838 = sshll.u32 %s1827, 4
          %s1839 = int_to_ptr.vmem [resolvable:$true] %s1838
          %1841 = dma.vmem_to_hbm [thread:$0]  %s1839, 64, %s1836, %s1824
        $region56: #{tpu_custom_call.1} parent=51 // pred_fallthru
          _
      $region52: #{tpu_custom_call.1} parent=5 // pred_fallthru
        _
      %p1842 = scmp.le.s32.totalorder 2, %s18
      // Predicated region
      $region57: #{tpu_custom_call.1} parent=5 // pred_check
        %p1843 = pneg %p1842
      $region58: #{tpu_custom_call.1} parent=5 // pred_check_branch
        %1845 = sbr.rel (%p1843) target = $region60
      $region59: #{tpu_custom_call.1} parent=5 // pred_region
        %s1846 = ssub.s32 %s18, 2
        // Predicated region
        $region61: #{tpu_custom_call.1} parent=59 // pred_check
          %p1847 = pneg %p220
        $region62: #{tpu_custom_call.1} parent=59 // pred_check_branch
          %1849 = sbr.rel (%p1847) target = $region64
        $region63: #{tpu_custom_call.1} parent=59 // pred_region
          %s1850 = sand.u32 %s205, 1
          %s1851 = scalar_lea.sflag [#allocation4], %s1850
          %s1852 = sand.u32 %s205, 1
          %s1853 = smul.addr %s1852, 4
          %s1854 = scalar_lea.vmem [#allocation3], %s1853
          %1855 = dma.done %s1851, 64
        $region64: #{tpu_custom_call.1} parent=59 // pred_fallthru
          _
      $region60: #{tpu_custom_call.1} parent=5 // pred_fallthru
        _
    $region6: #{tpu_custom_call.1} parent=1 // loop_footer
      %s22 = sadd.s32 1, %s18
    $region7: #{tpu_custom_call.1} parent=1 // loop_footer_branch
      %17 = sbr.rel target = $region3
    $region8: #{tpu_custom_call.1} parent=1 // loop_exit
      _
    %1856 = vsyncpa [#allocation4], 1
    %s1857 = scalar_lea.sflag [#allocation4], 1
    %1858 = vsyncpa %s1857, 1

</llo_original>
